<compile_context>
chip_gen: v6e
topology: v6e:2x2x1
jax: 0.10.0
libtpu: 0.0.40
codegen_flags: <defaults>
</compile_context>

<pallas_src>
import jax
import jax.numpy as jnp
from jax.experimental import pallas as pl
from jax.experimental.pallas import tpu as pltpu

LN_EPS = 1e-5
SUBLANE = 16  # bf16 sublane packing: keep batch tiles multiples of 16.


def _mish(x):
    # mish(x) = x * tanh(softplus(x)) == x * n / (n + 2), n = e^x (e^x + 2).
    # One EUP exp + one EUP approx reciprocal (skips the VALU Newton step of a
    # full-precision divide). Clamp: for x >= 20 the gate is already 1.0 (f32).
    e = jnp.exp(jnp.minimum(x, 20.0))
    n = e * (e + 2.0)
    return x * (n * pl.reciprocal(n + 2.0, approx=True))  # kernel-only (EUP rcp)


def _mish_ref(x):
    # Classic tanh(softplus) formulation, used only by the host-side reference.
    sp = jnp.maximum(x, 0.0) + jnp.log1p(jnp.exp(-jnp.abs(x)))
    return x * jnp.tanh(sp)


def _layernorm(x, gamma, beta):
    # Single-pass moments: E[x^2] - mean^2 (one VALU pass over the tile, and the
    # two lane reductions are independent). f32 throughout; clamp for safety.
    mu = jnp.mean(x, axis=-1, keepdims=True)
    ex2 = jnp.mean(x * x, axis=-1, keepdims=True)
    var = jnp.maximum(ex2 - mu * mu, 0.0)
    return (x - mu) * jax.lax.rsqrt(var + LN_EPS) * gamma + beta


def critic_kernel(
    x_ref,
    w1_ref, b1_ref, g1_ref, be1_ref,
    w2_ref, b2_ref, g2_ref, be2_ref,
    w3_ref, b3_ref,
    o_ref,
):
    x = x_ref[...]  # bf16 [tile, D_in]

    # ---- layer 1: Linear -> (Dropout p=0.01: identity at eval) -> LayerNorm -> Mish
    # TODO(synk): dropout(p=0.01) is training-only; inference path is identity.
    h = jnp.dot(x, w1_ref[...], preferred_element_type=jnp.float32) + b1_ref[...]
    h = _mish(_layernorm(h, g1_ref[...], be1_ref[...]))

    # ---- layer 2: Linear -> LayerNorm -> Mish
    h = jnp.dot(h.astype(jnp.bfloat16), w2_ref[...],
                preferred_element_type=jnp.float32) + b2_ref[...]
    h = _mish(_layernorm(h, g2_ref[...], be2_ref[...]))

    # ---- head: Linear(512 -> 1) as VPU multiply + XLU lane-reduce (no N=1 matmul)
    q = jnp.sum(h * w3_ref[...], axis=-1, keepdims=True) + b3_ref[...]
    o_ref[...] = q.astype(o_ref.dtype)


def _round_up(n, m):
    return ((n + m - 1) // m) * m


def critic_forward(x, params, *, batch_tile=512):
    """x: [B, state_size + action_size] float32 -> q: [B, 1] float32."""
    (w1, b1, g1, be1, w2, b2, g2, be2, w3_row, b3) = params
    B, D_in = x.shape
    assert w1.shape[0] == D_in, (w1.shape, D_in)

    # Balanced batch tiles: smallest step count with tiles <= batch_tile, then
    # split B evenly (rounded to the bf16 sublane quantum). Avoids a nearly
    # empty trailing step on the serial single-TC grid (v5e/v6e); on v7x any
    # multi-step grid is sharded across both TensorCores via "parallel".
    n_steps = max(1, -(-B // batch_tile))
    tile = _round_up(-(-B // n_steps), SUBLANE)
    Bp = tile * n_steps

    # Batch-pad and cast once in the wrapper (bf16 x halves its DMA bytes;
    # no feature-dim padding: full-extent last dims are legal block shapes).
    x_p = jnp.pad(x, ((0, Bp - B), (0, 0))).astype(jnp.bfloat16)

    full = lambda a: pl.BlockSpec(a.shape, lambda i: (0, 0))

    out = pl.pallas_call(
        critic_kernel,
        out_shape=jax.ShapeDtypeStruct((Bp, 1), jnp.float32),
        grid_spec=pl.GridSpec(
            grid=(n_steps,),
            in_specs=[
                pl.BlockSpec((tile, D_in), lambda i: (i, 0)),   # x tile
                full(w1), full(b1), full(g1), full(be1),
                full(w2), full(b2), full(g2), full(be2),
                full(w3_row), full(b3),
            ],
            out_specs=pl.BlockSpec((tile, 1), lambda i: (i, 0)),
        ),
        compiler_params=pltpu.CompilerParams(
            dimension_semantics=("parallel",),
        ),
    )(x_p, w1, b1, g1, be1, w2, b2, g2, be2, w3_row, b3)

    return out[:B]


def init_params(key, state_size, action_size, hidden=512):
    """Deterministic synthetic parameters, stored in their kernel-ready layouts
    (done ONCE here, not per forward call):
      * hidden-layer weights in bf16 (MXU-native, half the weight DMA bytes),
      * biases / LayerNorm params / the 1-wide head in f32,
      * head weight pre-reshaped to a lane-dense (1, hidden) row.
    """
    d_in = state_size + action_size
    ks = jax.random.split(key, 6)

    def lin(kw, kb, fan_in, fan_out, w_dtype):
        bound = 1.0 / jnp.sqrt(jnp.float32(fan_in))
        w = jax.random.uniform(kw, (fan_in, fan_out), jnp.float32, -bound, bound)
        b = jax.random.uniform(kb, (1, fan_out), jnp.float32, -bound, bound)
        return w.astype(w_dtype), b

    w1, b1 = lin(ks[0], ks[1], d_in, hidden, jnp.bfloat16)
    w2, b2 = lin(ks[2], ks[3], hidden, hidden, jnp.bfloat16)
    w3, b3 = lin(ks[4], ks[5], hidden, 1, jnp.float32)
    w3_row = w3.reshape(1, hidden)
    # TODO(synk): on v7x, w1/w2 could be stored fp8 (e4m3 + per-tensor scale) to
    # halve the dominant weight DMA; not done here (v5e/v6e lack an fp8 MXU path).

    g1 = jnp.ones((1, hidden), jnp.float32)    # LayerNorm weight
    be1 = jnp.zeros((1, hidden), jnp.float32)  # LayerNorm bias
    g2 = jnp.ones((1, hidden), jnp.float32)
    be2 = jnp.zeros((1, hidden), jnp.float32)

    return (w1, b1, g1, be1, w2, b2, g2, be2, w3_row, b3)


def _reference(x, params):
    """Pure-JAX reference mirroring the kernel's mixed precision (bf16 matmul
    operands, f32 accumulation / LayerNorm / elementwise) but using the classic
    tanh(softplus) Mish with exact division."""
    (w1, b1, g1, be1, w2, b2, g2, be2, w3_row, b3) = params
    h = jnp.dot(x.astype(jnp.bfloat16), w1,
                preferred_element_type=jnp.float32) + b1
    h = _mish_ref(_layernorm(h, g1, be1))
    h = jnp.dot(h.astype(jnp.bfloat16), w2,
                preferred_element_type=jnp.float32) + b2
    h = _mish_ref(_layernorm(h, g2, be2))
    return h @ w3_row.T + b3


if __name__ == "__main__":
    state_size, action_size = 24, 8
    d_in = state_size + action_size

    key = jax.random.PRNGKey(0)
    k_params, k_x, k_x2 = jax.random.split(key, 3)
    params = init_params(k_params, state_size, action_size)

    # Tolerance covers bf16 matmul operands plus the approx-reciprocal Mish gate
    # (both deliberate precision trades vs the f32 PyTorch reference).
    ATOL = RTOL = 2e-2

    # Small batch -> single 16-row grid step.
    x = jax.random.normal(k_x, (2, d_in), jnp.float32)
    q = jax.block_until_ready(critic_forward(x, params))
    q_ref = _reference(x, params)
    assert q.shape == (2, 1), q.shape
    assert jnp.allclose(q, q_ref, atol=ATOL, rtol=RTOL), (q, q_ref)

    # B=300 with the default tile -> ONE balanced 304-row step (no padded tail).
    x2 = jax.random.normal(k_x2, (300, d_in), jnp.float32)
    q2 = jax.block_until_ready(critic_forward(x2, params))
    q2_ref = _reference(x2, params)
    assert q2.shape == (300, 1), q2.shape
    assert jnp.allclose(q2, q2_ref, atol=ATOL, rtol=RTOL)

    # Same batch forced through the multi-step path: 3 balanced 112-row tiles.
    q3 = jax.block_until_ready(critic_forward(x2, params, batch_tile=128))
    assert q3.shape == (300, 1), q3.shape
    assert jnp.allclose(q3, q2_ref, atol=ATOL, rtol=RTOL)

    print("KERNEL_OK")
</pallas_src>

<mosaic_0001>
module attributes {stable_mosaic.version = 11 : i64} {
  func.func @critic_kernel(%arg0: i32, %arg1: memref<16x32xbf16, #tpu.memory_space<vmem>>, %arg2: memref<32x512xbf16, #tpu.memory_space<vmem>>, %arg3: memref<1x512xf32, #tpu.memory_space<vmem>>, %arg4: memref<1x512xf32, #tpu.memory_space<vmem>>, %arg5: memref<1x512xf32, #tpu.memory_space<vmem>>, %arg6: memref<512x512xbf16, #tpu.memory_space<vmem>>, %arg7: memref<1x512xf32, #tpu.memory_space<vmem>>, %arg8: memref<1x512xf32, #tpu.memory_space<vmem>>, %arg9: memref<1x512xf32, #tpu.memory_space<vmem>>, %arg10: memref<1x512xf32, #tpu.memory_space<vmem>>, %arg11: memref<1x1xf32, #tpu.memory_space<vmem>>, %arg12: memref<16x1xf32, #tpu.memory_space<vmem>>) attributes {dimension_semantics = [#tpu.dimension_semantics<parallel>], iteration_bounds = array<i64: 1>, scalar_prefetch = 0 : i64, scratch_operands = 0 : i64, tpu.core_type = #tpu.core_type<tc>, window_params = [{transform_indices = @transform_0, window_bounds = array<i64: 16, 32>}, {pipeline_mode = #tpu.pipeline_mode<synchronous>, transform_indices = @transform_1, window_bounds = array<i64: 32, 512>}, {pipeline_mode = #tpu.pipeline_mode<synchronous>, transform_indices = @transform_2, window_bounds = array<i64: 1, 512>}, {pipeline_mode = #tpu.pipeline_mode<synchronous>, transform_indices = @transform_3, window_bounds = array<i64: 1, 512>}, {pipeline_mode = #tpu.pipeline_mode<synchronous>, transform_indices = @transform_4, window_bounds = array<i64: 1, 512>}, {pipeline_mode = #tpu.pipeline_mode<synchronous>, transform_indices = @transform_5, window_bounds = array<i64: 512, 512>}, {pipeline_mode = #tpu.pipeline_mode<synchronous>, transform_indices = @transform_6, window_bounds = array<i64: 1, 512>}, {pipeline_mode = #tpu.pipeline_mode<synchronous>, transform_indices = @transform_7, window_bounds = array<i64: 1, 512>}, {pipeline_mode = #tpu.pipeline_mode<synchronous>, transform_indices = @transform_8, window_bounds = array<i64: 1, 512>}, {pipeline_mode = #tpu.pipeline_mode<synchronous>, transform_indices = @transform_9, window_bounds = array<i64: 1, 512>}, {pipeline_mode = #tpu.pipeline_mode<synchronous>, transform_indices = @transform_10, window_bounds = array<i64: 1, 1>}, {transform_indices = @transform_11, window_bounds = array<i64: 16, 1>}]} {
    %c0 = arith.constant 0 : index
    %c0_0 = arith.constant 0 : index
    %0 = vector.load %arg1[%c0, %c0_0] : memref<16x32xbf16, #tpu.memory_space<vmem>>, vector<16x32xbf16>
    %c0_1 = arith.constant 0 : index
    %c0_2 = arith.constant 0 : index
    %1 = vector.load %arg2[%c0_1, %c0_2] : memref<32x512xbf16, #tpu.memory_space<vmem>>, vector<32x512xbf16>
    %cst = arith.constant dense<0.000000e+00> : vector<16x512xf32>
    %2 = tpu.matmul %0, %1, %cst {dimension_numbers = #tpu.dot_dimension_numbers<[1], [0], [0], [1], [0, 0, 1, 1], [], []>} : vector<16x32xbf16>, vector<32x512xbf16>, vector<16x512xf32> -> vector<16x512xf32>
    %c0_3 = arith.constant 0 : index
    %c0_4 = arith.constant 0 : index
    %3 = vector.load %arg3[%c0_3, %c0_4] : memref<1x512xf32, #tpu.memory_space<vmem>>, vector<1x512xf32>
    %4 = vector.broadcast %3 : vector<1x512xf32> to vector<16x512xf32>
    %5 = arith.addf %2, %4 : vector<16x512xf32>
    %c0_5 = arith.constant 0 : index
    %c0_6 = arith.constant 0 : index
    %6 = vector.load %arg4[%c0_5, %c0_6] : memref<1x512xf32, #tpu.memory_space<vmem>>, vector<1x512xf32>
    %c0_7 = arith.constant 0 : index
    %c0_8 = arith.constant 0 : index
    %7 = vector.load %arg5[%c0_7, %c0_8] : memref<1x512xf32, #tpu.memory_space<vmem>>, vector<1x512xf32>
    %cst_9 = arith.constant dense<0.000000e+00> : vector<16xf32>
    %8 = vector.multi_reduction <add>, %5, %cst_9 [1] : vector<16x512xf32> to vector<16xf32>
    %9 = vector.shape_cast %8 : vector<16xf32> to vector<16x1xf32>
    %cst_10 = arith.constant 5.120000e+02 : f32
    %10 = vector.broadcast %cst_10 : f32 to vector<16x1xf32>
    %11 = arith.divf %9, %10 : vector<16x1xf32>
    %12 = arith.mulf %5, %5 : vector<16x512xf32>
    %cst_11 = arith.constant dense<0.000000e+00> : vector<16xf32>
    %13 = vector.multi_reduction <add>, %12, %cst_11 [1] : vector<16x512xf32> to vector<16xf32>
    %14 = vector.shape_cast %13 : vector<16xf32> to vector<16x1xf32>
    %cst_12 = arith.constant 5.120000e+02 : f32
    %15 = vector.broadcast %cst_12 : f32 to vector<16x1xf32>
    %16 = arith.divf %14, %15 : vector<16x1xf32>
    %17 = arith.mulf %11, %11 : vector<16x1xf32>
    %18 = arith.subf %16, %17 : vector<16x1xf32>
    %cst_13 = arith.constant 0.000000e+00 : f32
    %19 = vector.broadcast %cst_13 : f32 to vector<16x1xf32>
    %20 = arith.maximumf %18, %19 : vector<16x1xf32>
    %21 = vector.broadcast %11 : vector<16x1xf32> to vector<16x512xf32>
    %22 = arith.subf %5, %21 : vector<16x512xf32>
    %cst_14 = arith.constant 9.99999974E-6 : f32
    %23 = vector.broadcast %cst_14 : f32 to vector<16x1xf32>
    %24 = arith.addf %20, %23 : vector<16x1xf32>
    %25 = math.rsqrt %24 : vector<16x1xf32>
    %26 = vector.broadcast %25 : vector<16x1xf32> to vector<16x512xf32>
    %27 = arith.mulf %22, %26 : vector<16x512xf32>
    %28 = vector.broadcast %6 : vector<1x512xf32> to vector<16x512xf32>
    %29 = arith.mulf %27, %28 : vector<16x512xf32>
    %30 = vector.broadcast %7 : vector<1x512xf32> to vector<16x512xf32>
    %31 = arith.addf %29, %30 : vector<16x512xf32>
    %cst_15 = arith.constant 2.000000e+01 : f32
    %32 = vector.broadcast %cst_15 : f32 to vector<16x512xf32>
    %33 = arith.minimumf %31, %32 : vector<16x512xf32>
    %34 = math.exp %33 : vector<16x512xf32>
    %cst_16 = arith.constant 2.000000e+00 : f32
    %35 = vector.broadcast %cst_16 : f32 to vector<16x512xf32>
    %36 = arith.addf %34, %35 : vector<16x512xf32>
    %37 = arith.mulf %34, %36 : vector<16x512xf32>
    %cst_17 = arith.constant 2.000000e+00 : f32
    %38 = vector.broadcast %cst_17 : f32 to vector<16x512xf32>
    %39 = arith.addf %37, %38 : vector<16x512xf32>
    %40 = tpu.reciprocal %39 {approx = true} : vector<16x512xf32> -> vector<16x512xf32>
    %41 = arith.mulf %37, %40 : vector<16x512xf32>
    %42 = arith.mulf %31, %41 : vector<16x512xf32>
    %43 = arith.truncf %42 : vector<16x512xf32> to vector<16x512xbf16>
    %c0_18 = arith.constant 0 : index
    %c0_19 = arith.constant 0 : index
    %44 = vector.load %arg6[%c0_18, %c0_19] : memref<512x512xbf16, #tpu.memory_space<vmem>>, vector<512x512xbf16>
    %cst_20 = arith.constant dense<0.000000e+00> : vector<16x512xf32>
    %45 = tpu.matmul %43, %44, %cst_20 {dimension_numbers = #tpu.dot_dimension_numbers<[1], [0], [0], [1], [0, 0, 1, 1], [], []>} : vector<16x512xbf16>, vector<512x512xbf16>, vector<16x512xf32> -> vector<16x512xf32>
    %c0_21 = arith.constant 0 : index
    %c0_22 = arith.constant 0 : index
    %46 = vector.load %arg7[%c0_21, %c0_22] : memref<1x512xf32, #tpu.memory_space<vmem>>, vector<1x512xf32>
    %47 = vector.broadcast %46 : vector<1x512xf32> to vector<16x512xf32>
    %48 = arith.addf %45, %47 : vector<16x512xf32>
    %c0_23 = arith.constant 0 : index
    %c0_24 = arith.constant 0 : index
    %49 = vector.load %arg8[%c0_23, %c0_24] : memref<1x512xf32, #tpu.memory_space<vmem>>, vector<1x512xf32>
    %c0_25 = arith.constant 0 : index
    %c0_26 = arith.constant 0 : index
    %50 = vector.load %arg9[%c0_25, %c0_26] : memref<1x512xf32, #tpu.memory_space<vmem>>, vector<1x512xf32>
    %cst_27 = arith.constant dense<0.000000e+00> : vector<16xf32>
    %51 = vector.multi_reduction <add>, %48, %cst_27 [1] : vector<16x512xf32> to vector<16xf32>
    %52 = vector.shape_cast %51 : vector<16xf32> to vector<16x1xf32>
    %cst_28 = arith.constant 5.120000e+02 : f32
    %53 = vector.broadcast %cst_28 : f32 to vector<16x1xf32>
    %54 = arith.divf %52, %53 : vector<16x1xf32>
    %55 = arith.mulf %48, %48 : vector<16x512xf32>
    %cst_29 = arith.constant dense<0.000000e+00> : vector<16xf32>
    %56 = vector.multi_reduction <add>, %55, %cst_29 [1] : vector<16x512xf32> to vector<16xf32>
    %57 = vector.shape_cast %56 : vector<16xf32> to vector<16x1xf32>
    %cst_30 = arith.constant 5.120000e+02 : f32
    %58 = vector.broadcast %cst_30 : f32 to vector<16x1xf32>
    %59 = arith.divf %57, %58 : vector<16x1xf32>
    %60 = arith.mulf %54, %54 : vector<16x1xf32>
    %61 = arith.subf %59, %60 : vector<16x1xf32>
    %cst_31 = arith.constant 0.000000e+00 : f32
    %62 = vector.broadcast %cst_31 : f32 to vector<16x1xf32>
    %63 = arith.maximumf %61, %62 : vector<16x1xf32>
    %64 = vector.broadcast %54 : vector<16x1xf32> to vector<16x512xf32>
    %65 = arith.subf %48, %64 : vector<16x512xf32>
    %cst_32 = arith.constant 9.99999974E-6 : f32
    %66 = vector.broadcast %cst_32 : f32 to vector<16x1xf32>
    %67 = arith.addf %63, %66 : vector<16x1xf32>
    %68 = math.rsqrt %67 : vector<16x1xf32>
    %69 = vector.broadcast %68 : vector<16x1xf32> to vector<16x512xf32>
    %70 = arith.mulf %65, %69 : vector<16x512xf32>
    %71 = vector.broadcast %49 : vector<1x512xf32> to vector<16x512xf32>
    %72 = arith.mulf %70, %71 : vector<16x512xf32>
    %73 = vector.broadcast %50 : vector<1x512xf32> to vector<16x512xf32>
    %74 = arith.addf %72, %73 : vector<16x512xf32>
    %cst_33 = arith.constant 2.000000e+01 : f32
    %75 = vector.broadcast %cst_33 : f32 to vector<16x512xf32>
    %76 = arith.minimumf %74, %75 : vector<16x512xf32>
    %77 = math.exp %76 : vector<16x512xf32>
    %cst_34 = arith.constant 2.000000e+00 : f32
    %78 = vector.broadcast %cst_34 : f32 to vector<16x512xf32>
    %79 = arith.addf %77, %78 : vector<16x512xf32>
    %80 = arith.mulf %77, %79 : vector<16x512xf32>
    %cst_35 = arith.constant 2.000000e+00 : f32
    %81 = vector.broadcast %cst_35 : f32 to vector<16x512xf32>
    %82 = arith.addf %80, %81 : vector<16x512xf32>
    %83 = tpu.reciprocal %82 {approx = true} : vector<16x512xf32> -> vector<16x512xf32>
    %84 = arith.mulf %80, %83 : vector<16x512xf32>
    %85 = arith.mulf %74, %84 : vector<16x512xf32>
    %c0_36 = arith.constant 0 : index
    %c0_37 = arith.constant 0 : index
    %86 = vector.load %arg10[%c0_36, %c0_37] : memref<1x512xf32, #tpu.memory_space<vmem>>, vector<1x512xf32>
    %87 = vector.broadcast %86 : vector<1x512xf32> to vector<16x512xf32>
    %88 = arith.mulf %85, %87 : vector<16x512xf32>
    %cst_38 = arith.constant dense<0.000000e+00> : vector<16xf32>
    %89 = vector.multi_reduction <add>, %88, %cst_38 [1] : vector<16x512xf32> to vector<16xf32>
    %90 = vector.shape_cast %89 : vector<16xf32> to vector<16x1xf32>
    %c0_39 = arith.constant 0 : index
    %c0_40 = arith.constant 0 : index
    %91 = vector.load %arg11[%c0_39, %c0_40] : memref<1x1xf32, #tpu.memory_space<vmem>>, vector<1x1xf32>
    %92 = vector.broadcast %91 : vector<1x1xf32> to vector<16x1xf32>
    %93 = arith.addf %90, %92 : vector<16x1xf32>
    %c0_41 = arith.constant 0 : index
    %c0_42 = arith.constant 0 : index
    %94 = vector.load %arg12[%c0_41, %c0_42] : memref<16x1xf32, #tpu.memory_space<vmem>>, vector<16x1xf32>
    tpu.vector_store %arg12[%c0_41, %c0_42], %93 {strides = array<i32>} : memref<16x1xf32, #tpu.memory_space<vmem>>, vector<16x1xf32>,
    return
  }
  func.func @transform_0(%arg0: i32) -> (i32, i32) {
    %c0_i32 = arith.constant 0 : i32
    %c0_i32_0 = arith.constant 0 : i32
    return %arg0, %c0_i32 : i32, i32
  }
  func.func @transform_1(%arg0: i32) -> (i32, i32) {
    %c0_i32 = arith.constant 0 : i32
    %c0_i32_0 = arith.constant 0 : i32
    %c0_i32_1 = arith.constant 0 : i32
    return %c0_i32, %c0_i32_0 : i32, i32
  }
  func.func @transform_2(%arg0: i32) -> (i32, i32) {
    %c0_i32 = arith.constant 0 : i32
    %c0_i32_0 = arith.constant 0 : i32
    %c0_i32_1 = arith.constant 0 : i32
    return %c0_i32, %c0_i32_0 : i32, i32
  }
  func.func @transform_3(%arg0: i32) -> (i32, i32) {
    %c0_i32 = arith.constant 0 : i32
    %c0_i32_0 = arith.constant 0 : i32
    %c0_i32_1 = arith.constant 0 : i32
    return %c0_i32, %c0_i32_0 : i32, i32
  }
  func.func @transform_4(%arg0: i32) -> (i32, i32) {
    %c0_i32 = arith.constant 0 : i32
    %c0_i32_0 = arith.constant 0 : i32
    %c0_i32_1 = arith.constant 0 : i32
    return %c0_i32, %c0_i32_0 : i32, i32
  }
  func.func @transform_5(%arg0: i32) -> (i32, i32) {
    %c0_i32 = arith.constant 0 : i32
    %c0_i32_0 = arith.constant 0 : i32
    %c0_i32_1 = arith.constant 0 : i32
    return %c0_i32, %c0_i32_0 : i32, i32
  }
  func.func @transform_6(%arg0: i32) -> (i32, i32) {
    %c0_i32 = arith.constant 0 : i32
    %c0_i32_0 = arith.constant 0 : i32
    %c0_i32_1 = arith.constant 0 : i32
    return %c0_i32, %c0_i32_0 : i32, i32
  }
  func.func @transform_7(%arg0: i32) -> (i32, i32) {
    %c0_i32 = arith.constant 0 : i32
    %c0_i32_0 = arith.constant 0 : i32
    %c0_i32_1 = arith.constant 0 : i32
    return %c0_i32, %c0_i32_0 : i32, i32
  }
  func.func @transform_8(%arg0: i32) -> (i32, i32) {
    %c0_i32 = arith.constant 0 : i32
    %c0_i32_0 = arith.constant 0 : i32
    %c0_i32_1 = arith.constant 0 : i32
    return %c0_i32, %c0_i32_0 : i32, i32
  }
  func.func @transform_9(%arg0: i32) -> (i32, i32) {
    %c0_i32 = arith.constant 0 : i32
    %c0_i32_0 = arith.constant 0 : i32
    %c0_i32_1 = arith.constant 0 : i32
    return %c0_i32, %c0_i32_0 : i32, i32
  }
  func.func @transform_10(%arg0: i32) -> (i32, i32) {
    %c0_i32 = arith.constant 0 : i32
    %c0_i32_0 = arith.constant 0 : i32
    %c0_i32_1 = arith.constant 0 : i32
    return %c0_i32, %c0_i32_0 : i32, i32
  }
  func.func @transform_11(%arg0: i32) -> (i32, i32) {
    %c0_i32 = arith.constant 0 : i32
    %c0_i32_0 = arith.constant 0 : i32
    return %arg0, %c0_i32 : i32, i32
  }
}

</mosaic_0001>

<llo_original>
// kernel: tpu_custom_call.1
$region0: #{tpu_custom_call.1}
  #allocation0 [shape = 'u32[]', space=smem, size = 0x4, offset = 0x4, fixed_abs, tag = 'smem constant byte address 0x4 - core index']
  #allocation1 [shape = 'u32[144,128]{1,0:T(1,128)}', space=vmem, size = 0x12000, scoped, tag = 'internal scratch']
  #allocation2 [shape = 'f32[1,1]{1,0:T(1,128)S(1)}', space=vmem, size = 0x200, scoped, tag = 'scoped memory for tpu_custom_call.1']
  %s0 = inlined_call_operand.hbm [shape: bf16[16,32], index: 0, kind: input, shape index: {}]
  %s1 = inlined_call_operand.hbm [shape: bf16[32,512], index: 1, kind: input, shape index: {}]
  %s2 = inlined_call_operand.vmem [shape: f32[1,512], index: 2, kind: input, shape index: {}]
  %s3 = inlined_call_operand.hbm [shape: f32[1,512], index: 3, kind: input, shape index: {}]
  %s4 = inlined_call_operand.vmem [shape: f32[1,512], index: 4, kind: input, shape index: {}]
  %s5 = inlined_call_operand.hbm [shape: bf16[512,512], index: 5, kind: input, shape index: {}]
  %s6 = inlined_call_operand.vmem [shape: f32[1,512], index: 6, kind: input, shape index: {}]
  %s7 = inlined_call_operand.hbm [shape: f32[1,512], index: 7, kind: input, shape index: {}]
  %s8 = inlined_call_operand.vmem [shape: f32[1,512], index: 8, kind: input, shape index: {}]
  %s9 = inlined_call_operand.hbm [shape: f32[1,512], index: 9, kind: input, shape index: {}]
  %s10 = inlined_call_operand.<no memory space> [shape: f32[1,1], index: 10, kind: input, shape index: {}]
  %s11 = inlined_call_operand.vmem [shape: f32[16,1], index: 11, kind: output, shape index: {}]
  %s12 = sld [smem:[#allocation0]]
  $region78: #{tpu_custom_call.1} parent=0
    _
  %s14 = ssub.s32 1, %s12
  %s15 = scalar_select 0, %s14, %s12
  %v16 = vstv %s10
  %17 = vst [vmem:[#allocation2] sm:$0x1] %v16
  $region1: #{tpu_custom_call.1} parent=0
    #allocation3 [shape = 'u8[4096]{0}', space=vmem, size = 0x1000, scoped, tag = 'input window, operand 0, single buffered']
    #allocation4 [shape = 's32[1]{0}', space=sflag, size = 0x4, scoped, tag = 'scoped memory for tpu_custom_call.1']
    #allocation5 [shape = 'u8[32768]{0}', space=vmem, size = 0x8000, scoped, tag = 'input window, operand 1, single buffered']
    #allocation6 [shape = 's32[1]{0}', space=sflag, size = 0x4, scoped, tag = 'scoped memory for tpu_custom_call.1']
    #allocation7 [shape = 'u8[2048]{0}', space=vmem, size = 0x800, scoped, tag = 'input window, operand 3, single buffered']
    #allocation8 [shape = 'u8[524288]{0}', space=vmem, size = 0x80000, scoped, tag = 'input window, operand 5, single buffered']
    #allocation9 [shape = 's32[1]{0}', space=sflag, size = 0x4, scoped, tag = 'scoped memory for tpu_custom_call.1']
    #allocation10 [shape = 'u8[2048]{0}', space=vmem, size = 0x800, scoped, tag = 'input window, operand 7, single buffered']
    #allocation11 [shape = 'u8[2048]{0}', space=vmem, size = 0x800, scoped, tag = 'input window, operand 9, single buffered']
    #allocation12 [shape = 's32[1]{0}', space=sflag, size = 0x4, scoped, tag = 'scoped memory for tpu_custom_call.1']
    %18 = vsyncpa [#allocation4], 0
    %19 = vsyncpa [#allocation6], 0
    %20 = vsyncpa [#allocation9], 0
    %21 = vsyncpa [#allocation12], 0
    // Predicated region
    $region2: #{tpu_custom_call.1} parent=1 // pred_check
      _
    $region3: #{tpu_custom_call.1} parent=1 // pred_check_branch
      %23 = sbr.rel (0) target = $region5
    $region4: #{tpu_custom_call.1} parent=1 // pred_region
      %s25 = ssub.s32 128, 128
      %26 = vsyncadd [#allocation4], %s25
      %s27 = sshll.u32 [#allocation3], 4
      %s28 = int_to_ptr.vmem [resolvable:$true] %s27
      %33 = dma.hbm_to_vmem [thread:$0]  %s0, 128, %s28, [#allocation4], 64, 64, 4
    $region5: #{tpu_custom_call.1} parent=1 // pred_fallthru
      _
    // Predicated region
    $region6: #{tpu_custom_call.1} parent=1 // pred_check
      _
    $region7: #{tpu_custom_call.1} parent=1 // pred_check_branch
      %35 = sbr.rel (0) target = $region9
    $region8: #{tpu_custom_call.1} parent=1 // pred_region
      %s37 = ssub.s32 1024, 1024
      %38 = vsyncadd [#allocation6], %s37
      %s39 = sshll.u32 [#allocation5], 4
      %s40 = int_to_ptr.vmem [resolvable:$true] %s39
      %45 = dma.hbm_to_vmem [thread:$0]  %s1, 1024, %s40, [#allocation6], 256, 256, 16
    $region9: #{tpu_custom_call.1} parent=1 // pred_fallthru
      _
    // Predicated region
    $region10: #{tpu_custom_call.1} parent=1 // pred_check
      _
    $region11: #{tpu_custom_call.1} parent=1 // pred_check_branch
      %47 = sbr.rel (0) target = $region13
    $region12: #{tpu_custom_call.1} parent=1 // pred_region
      _
    $region13: #{tpu_custom_call.1} parent=1 // pred_fallthru
      _
    // Predicated region
    $region14: #{tpu_custom_call.1} parent=1 // pred_check
      _
    $region15: #{tpu_custom_call.1} parent=1 // pred_check_branch
      %49 = sbr.rel (0) target = $region17
    $region16: #{tpu_custom_call.1} parent=1 // pred_region
      %s51 = ssub.s32 64, 64
      %52 = vsyncadd [#allocation6], %s51
      %s54 = sshll.u32 [#allocation7], 4
      %s55 = int_to_ptr.vmem [resolvable:$true] %s54
      %57 = dma.hbm_to_vmem [thread:$0]  %s3, 64, %s55, [#allocation6]
    $region17: #{tpu_custom_call.1} parent=1 // pred_fallthru
      _
    // Predicated region
    $region18: #{tpu_custom_call.1} parent=1 // pred_check
      _
    $region19: #{tpu_custom_call.1} parent=1 // pred_check_branch
      %59 = sbr.rel (0) target = $region21
    $region20: #{tpu_custom_call.1} parent=1 // pred_region
      _
    $region21: #{tpu_custom_call.1} parent=1 // pred_fallthru
      _
    // Predicated region
    $region22: #{tpu_custom_call.1} parent=1 // pred_check
      _
    $region23: #{tpu_custom_call.1} parent=1 // pred_check_branch
      %61 = sbr.rel (0) target = $region25
    $region24: #{tpu_custom_call.1} parent=1 // pred_region
      %s63 = ssub.s32 16384, 16384
      %64 = vsyncadd [#allocation9], %s63
      %s65 = sshll.u32 [#allocation8], 4
      %s66 = int_to_ptr.vmem [resolvable:$true] %s65
      %71 = dma.hbm_to_vmem [thread:$0]  %s5, 16384, %s66, [#allocation9], 256, 256, 16
    $region25: #{tpu_custom_call.1} parent=1 // pred_fallthru
      _
    // Predicated region
    $region26: #{tpu_custom_call.1} parent=1 // pred_check
      _
    $region27: #{tpu_custom_call.1} parent=1 // pred_check_branch
      %73 = sbr.rel (0) target = $region29
    $region28: #{tpu_custom_call.1} parent=1 // pred_region
      _
    $region29: #{tpu_custom_call.1} parent=1 // pred_fallthru
      _
    // Predicated region
    $region30: #{tpu_custom_call.1} parent=1 // pred_check
      _
    $region31: #{tpu_custom_call.1} parent=1 // pred_check_branch
      %75 = sbr.rel (0) target = $region33
    $region32: #{tpu_custom_call.1} parent=1 // pred_region
      %s77 = ssub.s32 64, 64
      %78 = vsyncadd [#allocation9], %s77
      %s80 = sshll.u32 [#allocation10], 4
      %s81 = int_to_ptr.vmem [resolvable:$true] %s80
      %83 = dma.hbm_to_vmem [thread:$0]  %s7, 64, %s81, [#allocation9]
    $region33: #{tpu_custom_call.1} parent=1 // pred_fallthru
      _
    // Predicated region
    $region34: #{tpu_custom_call.1} parent=1 // pred_check
      _
    $region35: #{tpu_custom_call.1} parent=1 // pred_check_branch
      %85 = sbr.rel (0) target = $region37
    $region36: #{tpu_custom_call.1} parent=1 // pred_region
      _
    $region37: #{tpu_custom_call.1} parent=1 // pred_fallthru
      _
    // Predicated region
    $region38: #{tpu_custom_call.1} parent=1 // pred_check
      _
    $region39: #{tpu_custom_call.1} parent=1 // pred_check_branch
      %87 = sbr.rel (0) target = $region41
    $region40: #{tpu_custom_call.1} parent=1 // pred_region
      %s89 = ssub.s32 64, 64
      %90 = vsyncadd [#allocation12], %s89
      %s92 = sshll.u32 [#allocation11], 4
      %s93 = int_to_ptr.vmem [resolvable:$true] %s92
      %95 = dma.hbm_to_vmem [thread:$0]  %s9, 64, %s93, [#allocation12]
    $region41: #{tpu_custom_call.1} parent=1 // pred_fallthru
      _
    // Predicated region
    $region42: #{tpu_custom_call.1} parent=1 // pred_check
      _
    $region43: #{tpu_custom_call.1} parent=1 // pred_check_branch
      %97 = sbr.rel (0) target = $region45
    $region44: #{tpu_custom_call.1} parent=1 // pred_region
      _
    $region45: #{tpu_custom_call.1} parent=1 // pred_fallthru
      _
    // Predicated region
    $region46: #{tpu_custom_call.1} parent=1 // pred_check
      _
    $region47: #{tpu_custom_call.1} parent=1 // pred_check_branch
      %99 = sbr.rel (0) target = $region49
    $region48: #{tpu_custom_call.1} parent=1 // pred_region
      %100 = dma.done [#allocation4], 128
    $region49: #{tpu_custom_call.1} parent=1 // pred_fallthru
      _
    // Predicated region
    $region50: #{tpu_custom_call.1} parent=1 // pred_check
      _
    $region51: #{tpu_custom_call.1} parent=1 // pred_check_branch
      %102 = sbr.rel (0) target = $region53
    $region52: #{tpu_custom_call.1} parent=1 // pred_region
      %103 = dma.done [#allocation6], 1024
    $region53: #{tpu_custom_call.1} parent=1 // pred_fallthru
      _
    // Predicated region
    $region54: #{tpu_custom_call.1} parent=1 // pred_check
      _
    $region55: #{tpu_custom_call.1} parent=1 // pred_check_branch
      %105 = sbr.rel (0) target = $region57
    $region56: #{tpu_custom_call.1} parent=1 // pred_region
      %106 = dma.done [#allocation6], 64
    $region57: #{tpu_custom_call.1} parent=1 // pred_fallthru
      _
    // Predicated region
    $region58: #{tpu_custom_call.1} parent=1 // pred_check
      _
    $region59: #{tpu_custom_call.1} parent=1 // pred_check_branch
      %108 = sbr.rel (0) target = $region61
    $region60: #{tpu_custom_call.1} parent=1 // pred_region
      %109 = dma.done [#allocation9], 16384
    $region61: #{tpu_custom_call.1} parent=1 // pred_fallthru
      _
    // Predicated region
    $region62: #{tpu_custom_call.1} parent=1 // pred_check
      _
    $region63: #{tpu_custom_call.1} parent=1 // pred_check_branch
      %111 = sbr.rel (0) target = $region65
    $region64: #{tpu_custom_call.1} parent=1 // pred_region
      %112 = dma.done [#allocation9], 64
    $region65: #{tpu_custom_call.1} parent=1 // pred_fallthru
      _
    // Predicated region
    $region66: #{tpu_custom_call.1} parent=1 // pred_check
      _
    $region67: #{tpu_custom_call.1} parent=1 // pred_check_branch
      %114 = sbr.rel (0) target = $region69
    $region68: #{tpu_custom_call.1} parent=1 // pred_region
      %115 = dma.done [#allocation12], 64
    $region69: #{tpu_custom_call.1} parent=1 // pred_fallthru
      _
    %v117 = vld [vmem:[#allocation3] sm:$0xf]
    %v118 = vld [vmem:[#allocation3 + $0x4] sm:$0xf]
    %v119 = vld [vmem:[#allocation5] sm:$0xff]
    %v120 = vld [vmem:[#allocation5 + $0x8] sm:$0xff]
    %v121 = vld [vmem:[#allocation5 + $0x10] sm:$0xff]
    %v122 = vld [vmem:[#allocation5 + $0x18] sm:$0xff]
    %v123 = vld [vmem:[#allocation5 + $0x20] sm:$0xff]
    %v124 = vld [vmem:[#allocation5 + $0x28] sm:$0xff]
    %v125 = vld [vmem:[#allocation5 + $0x30] sm:$0xff]
    %v126 = vld [vmem:[#allocation5 + $0x38] sm:$0xff]
    %v127 = vld [vmem:[%s2] sm:$0xf]
    %v129 = vlaneseq
    %v130 = vshrl.u32 %v129, 7
    %v131 = vsub.s32 0, %v130
    %v132 = vrot.slane %v127, %v131
    %v133 = vlaneseq
    %v134 = vshrl.u32 %v133, 7
    %v135 = vsub.s32 1, %v134
    %v136 = vrot.slane %v127, %v135
    %v137 = vlaneseq
    %v138 = vshrl.u32 %v137, 7
    %v139 = vsub.s32 2, %v138
    %v140 = vrot.slane %v127, %v139
    %v141 = vlaneseq
    %v142 = vshrl.u32 %v141, 7
    %v143 = vsub.s32 3, %v142
    %v144 = vrot.slane %v127, %v143
    %v151 = vunpack.c.l.b16 %v117
    %v152 = vunpack.c.l.b16 %v118
    %v153 = vpack.c.b16 %v152, %v151
    %v162 = vunpack.c.l.b16 %v119
    %v163 = vunpack.c.h.b16 %v119
    %v164 = vunpack.c.l.b16 %v120
    %v165 = vunpack.c.h.b16 %v120
    %v166 = vunpack.c.l.b16 %v121
    %v167 = vunpack.c.h.b16 %v121
    %v168 = vunpack.c.l.b16 %v122
    %v169 = vunpack.c.h.b16 %v122
    %v170 = vunpack.c.l.b16 %v123
    %v171 = vunpack.c.h.b16 %v123
    %v172 = vunpack.c.l.b16 %v124
    %v173 = vunpack.c.h.b16 %v124
    %v174 = vunpack.c.l.b16 %v125
    %v175 = vunpack.c.h.b16 %v125
    %v176 = vunpack.c.l.b16 %v126
    %v177 = vunpack.c.h.b16 %v126
    %v178 = vpack.c.b16 %v166, %v162
    %v179 = vpack.c.b16 %v167, %v163
    %v180 = vpack.c.b16 %v168, %v164
    %v181 = vpack.c.b16 %v169, %v165
    %v182 = vpack.c.b16 %v174, %v170
    %v183 = vpack.c.b16 %v175, %v171
    %v184 = vpack.c.b16 %v176, %v172
    %v185 = vpack.c.b16 %v177, %v173
    %vm194 = vcmask 261120
    %v196 = vsel %vm194, %v153, 0
    %198 = vmatprep.subr.bf16.mxu0 0
    %199 = vmatpush1.bf16.msra.mxu0 0
    %200 = vmatprep.subr.bf16.mxu0 0
    %201 = vmatpush1.bf16.msra.mxu0 0
    %202 = vmatprep.subr.bf16.mxu0 0
    %203 = vmatpush1.bf16.msra.mxu0 0
    %204 = vmatprep.subr.bf16.mxu0 0
    %205 = vmatpush1.bf16.msra.mxu0 0
    %206 = vmatprep.subr.bf16.mxu0 0
    %207 = vmatpush1.bf16.msra.mxu0 0
    %208 = vmatprep.subr.bf16.mxu0 0
    %209 = vmatpush1.bf16.msra.mxu0 0
    %210 = vmatprep.subr.bf16.mxu0 %v183
    %211 = vmatpush1.bf16.msra.mxu0 %v182
    %212 = vmatprep.subr.bf16.mxu0 %v179
    %213 = vmatpush1.bf16.msra.mxu0 %v178
    %214 = vmatprep.subr.bf16.mxu0 0
    %215 = vmatpush2.bf16.msra.mxu0 0
    %216 = vmatprep.subr.bf16.mxu0 0
    %217 = vmatpush2.bf16.msra.mxu0 0
    %218 = vmatprep.subr.bf16.mxu0 0
    %219 = vmatpush2.bf16.msra.mxu0 0
    %220 = vmatprep.subr.bf16.mxu0 0
    %221 = vmatpush2.bf16.msra.mxu0 0
    %222 = vmatprep.subr.bf16.mxu0 0
    %223 = vmatpush2.bf16.msra.mxu0 0
    %224 = vmatprep.subr.bf16.mxu0 0
    %225 = vmatpush2.bf16.msra.mxu0 0
    %226 = vmatprep.subr.bf16.mxu0 0
    %227 = vmatpush2.bf16.msra.mxu0 0
    %228 = vmatprep.subr.bf16.mxu0 0
    %229 = vmatpush2.bf16.msra.mxu0 0
    %230 = vmatprep.mubr.bf16.mxu0 0
    %231 = vmatmul.mubr.bf16.gmra.mxu0 %v196
    %v232 = vpop.f32.mrf.mxu0
    %v233 = vadd.f32 %v132, %v232
    %v234 = vpop.f32.mrf.mxu0
    %v235 = vadd.f32 %v136, %v234
    %v236 = vpop.f32.mrf.mxu0
    %v237 = vadd.f32 %v132, %v236
    %v238 = vpop.f32.mrf.mxu0
    %v239 = vadd.f32 %v136, %v238
    %240 = vdwg.mxu0
    %241 = vmatprep.subr.bf16.mxu0 0
    %242 = vmatpush1.bf16.msra.mxu0 0
    %243 = vmatprep.subr.bf16.mxu0 0
    %244 = vmatpush1.bf16.msra.mxu0 0
    %245 = vmatprep.subr.bf16.mxu0 0
    %246 = vmatpush1.bf16.msra.mxu0 0
    %247 = vmatprep.subr.bf16.mxu0 0
    %248 = vmatpush1.bf16.msra.mxu0 0
    %249 = vmatprep.subr.bf16.mxu0 0
    %250 = vmatpush1.bf16.msra.mxu0 0
    %251 = vmatprep.subr.bf16.mxu0 0
    %252 = vmatpush1.bf16.msra.mxu0 0
    %253 = vmatprep.subr.bf16.mxu0 %v185
    %254 = vmatpush1.bf16.msra.mxu0 %v184
    %255 = vmatprep.subr.bf16.mxu0 %v181
    %256 = vmatpush1.bf16.msra.mxu0 %v180
    %257 = vmatprep.subr.bf16.mxu0 0
    %258 = vmatpush2.bf16.msra.mxu0 0
    %259 = vmatprep.subr.bf16.mxu0 0
    %260 = vmatpush2.bf16.msra.mxu0 0
    %261 = vmatprep.subr.bf16.mxu0 0
    %262 = vmatpush2.bf16.msra.mxu0 0
    %263 = vmatprep.subr.bf16.mxu0 0
    %264 = vmatpush2.bf16.msra.mxu0 0
    %265 = vmatprep.subr.bf16.mxu0 0
    %266 = vmatpush2.bf16.msra.mxu0 0
    %267 = vmatprep.subr.bf16.mxu0 0
    %268 = vmatpush2.bf16.msra.mxu0 0
    %269 = vmatprep.subr.bf16.mxu0 0
    %270 = vmatpush2.bf16.msra.mxu0 0
    %271 = vmatprep.subr.bf16.mxu0 0
    %272 = vmatpush2.bf16.msra.mxu0 0
    %273 = vmatprep.mubr.bf16.mxu0 0
    %274 = vmatmul.mubr.bf16.gmra.mxu0 %v196
    %v275 = vpop.f32.mrf.mxu0
    %v276 = vadd.f32 %v140, %v275
    %v277 = vpop.f32.mrf.mxu0
    %v278 = vadd.f32 %v144, %v277
    %v279 = vpop.f32.mrf.mxu0
    %v280 = vadd.f32 %v140, %v279
    %v281 = vpop.f32.mrf.mxu0
    %v282 = vadd.f32 %v144, %v281
    %283 = vdwg.mxu0
    %v284 = vld [vmem:[#allocation7] sm:$0xf]
    %v285 = vld [vmem:[%s4] sm:$0xf]
    %v286 = vadd.f32 %v233, %v235
    %v287 = vadd.f32 %v286, %v276
    %v288 = vadd.f32 %v287, %v278
    %289 = vadd.xlane.f32.xlu0 %v288
    %v290 = vpop.xlane.xlu0 %289
    %v291 = vadd.f32 %v237, %v239
    %v292 = vadd.f32 %v291, %v280
    %v293 = vadd.f32 %v292, %v282
    %294 = vadd.xlane.f32.xlu0 %v293
    %v295 = vpop.xlane.xlu0 %294
    %v296 = vrcp.pop 512.0
    %v297 = vmul.f32 %v290, %v296
    %v298 = vmul.f32 %v295, %v296
    %v299 = vmul.f32 %v233, %v233
    %v300 = vmul.f32 %v235, %v235
    %v301 = vmul.f32 %v276, %v276
    %v302 = vmul.f32 %v278, %v278
    %v303 = vmul.f32 %v237, %v237
    %v304 = vmul.f32 %v239, %v239
    %v305 = vmul.f32 %v280, %v280
    %v306 = vmul.f32 %v282, %v282
    %v307 = vadd.f32 %v299, %v300
    %v308 = vadd.f32 %v307, %v301
    %v309 = vadd.f32 %v308, %v302
    %310 = vadd.xlane.f32.xlu0 %v309
    %v311 = vpop.xlane.xlu0 %310
    %v312 = vadd.f32 %v303, %v304
    %v313 = vadd.f32 %v312, %v305
    %v314 = vadd.f32 %v313, %v306
    %315 = vadd.xlane.f32.xlu0 %v314
    %v316 = vpop.xlane.xlu0 %315
    %v317 = vmul.f32 %v311, %v296
    %v318 = vmul.f32 %v316, %v296
    %v319 = vmul.f32 %v297, %v297
    %v320 = vmul.f32 %v298, %v298
    %v321 = vsub.f32 %v317, %v319
    %v322 = vsub.f32 %v318, %v320
    %v323 = vmax.f32 %v321, 0.0
    %v324 = vmax.f32 %v322, 0.0
    %v325 = vsub.f32 %v233, %v297
    %v326 = vsub.f32 %v235, %v297
    %v327 = vsub.f32 %v276, %v297
    %v328 = vsub.f32 %v278, %v297
    %v329 = vsub.f32 %v237, %v298
    %v330 = vsub.f32 %v239, %v298
    %v331 = vsub.f32 %v280, %v298
    %v332 = vsub.f32 %v282, %v298
    %v333 = vadd.f32 %v323, 1e-05
    %v334 = vadd.f32 %v324, 1e-05
    %v335 = vrsqrt.pop %v333
    %v336 = vrsqrt.pop %v334
    %v337 = vmul.f32 %v325, %v335
    %v338 = vmul.f32 %v326, %v335
    %v339 = vmul.f32 %v327, %v335
    %v340 = vmul.f32 %v328, %v335
    %v341 = vmul.f32 %v329, %v336
    %v342 = vmul.f32 %v330, %v336
    %v343 = vmul.f32 %v331, %v336
    %v344 = vmul.f32 %v332, %v336
    %v346 = vlaneseq
    %v347 = vshrl.u32 %v346, 7
    %v348 = vsub.s32 0, %v347
    %v349 = vrot.slane %v284, %v348
    %v350 = vlaneseq
    %v351 = vshrl.u32 %v350, 7
    %v352 = vsub.s32 1, %v351
    %v353 = vrot.slane %v284, %v352
    %v354 = vlaneseq
    %v355 = vshrl.u32 %v354, 7
    %v356 = vsub.s32 2, %v355
    %v357 = vrot.slane %v284, %v356
    %v358 = vlaneseq
    %v359 = vshrl.u32 %v358, 7
    %v360 = vsub.s32 3, %v359
    %v361 = vrot.slane %v284, %v360
    %v366 = vmul.f32 %v337, %v349
    %v367 = vmul.f32 %v338, %v353
    %v368 = vmul.f32 %v339, %v357
    %v369 = vmul.f32 %v340, %v361
    %v370 = vmul.f32 %v341, %v349
    %v371 = vmul.f32 %v342, %v353
    %v372 = vmul.f32 %v343, %v357
    %v373 = vmul.f32 %v344, %v361
    %v375 = vlaneseq
    %v376 = vshrl.u32 %v375, 7
    %v377 = vsub.s32 0, %v376
    %v378 = vrot.slane %v285, %v377
    %v379 = vlaneseq
    %v380 = vshrl.u32 %v379, 7
    %v381 = vsub.s32 1, %v380
    %v382 = vrot.slane %v285, %v381
    %v383 = vlaneseq
    %v384 = vshrl.u32 %v383, 7
    %v385 = vsub.s32 2, %v384
    %v386 = vrot.slane %v285, %v385
    %v387 = vlaneseq
    %v388 = vshrl.u32 %v387, 7
    %v389 = vsub.s32 3, %v388
    %v390 = vrot.slane %v285, %v389
    %v395 = vadd.f32 %v366, %v378
    %v396 = vadd.f32 %v367, %v382
    %v397 = vadd.f32 %v368, %v386
    %v398 = vadd.f32 %v369, %v390
    %v399 = vadd.f32 %v370, %v378
    %v400 = vadd.f32 %v371, %v382
    %v401 = vadd.f32 %v372, %v386
    %v402 = vadd.f32 %v373, %v390
    %v403 = vmin.f32 %v395, 20.0
    %v404 = vmin.f32 %v396, 20.0
    %v405 = vmin.f32 %v397, 20.0
    %v406 = vmin.f32 %v398, 20.0
    %v407 = vmin.f32 %v399, 20.0
    %v408 = vmin.f32 %v400, 20.0
    %v409 = vmin.f32 %v401, 20.0
    %v410 = vmin.f32 %v402, 20.0
    %v411 = vmul.f32 %v403, 1.442695
    %v412 = vpow.pop %v411
    %v413 = vmul.f32 %v404, 1.442695
    %v414 = vpow.pop %v413
    %v415 = vmul.f32 %v405, 1.442695
    %v416 = vpow.pop %v415
    %v417 = vmul.f32 %v406, 1.442695
    %v418 = vpow.pop %v417
    %v419 = vmul.f32 %v407, 1.442695
    %v420 = vpow.pop %v419
    %v421 = vmul.f32 %v408, 1.442695
    %v422 = vpow.pop %v421
    %v423 = vmul.f32 %v409, 1.442695
    %v424 = vpow.pop %v423
    %v425 = vmul.f32 %v410, 1.442695
    %v426 = vpow.pop %v425
    %v427 = vadd.f32 %v412, 2.0
    %v428 = vadd.f32 %v414, 2.0
    %v429 = vadd.f32 %v416, 2.0
    %v430 = vadd.f32 %v418, 2.0
    %v431 = vadd.f32 %v420, 2.0
    %v432 = vadd.f32 %v422, 2.0
    %v433 = vadd.f32 %v424, 2.0
    %v434 = vadd.f32 %v426, 2.0
    %v435 = vmul.f32 %v412, %v427
    %v436 = vmul.f32 %v414, %v428
    %v437 = vmul.f32 %v416, %v429
    %v438 = vmul.f32 %v418, %v430
    %v439 = vmul.f32 %v420, %v431
    %v440 = vmul.f32 %v422, %v432
    %v441 = vmul.f32 %v424, %v433
    %v442 = vmul.f32 %v426, %v434
    %v443 = vadd.f32 %v435, 2.0
    %v444 = vadd.f32 %v436, 2.0
    %v445 = vadd.f32 %v437, 2.0
    %v446 = vadd.f32 %v438, 2.0
    %v447 = vadd.f32 %v439, 2.0
    %v448 = vadd.f32 %v440, 2.0
    %v449 = vadd.f32 %v441, 2.0
    %v450 = vadd.f32 %v442, 2.0
    %v451 = vrcp.pop %v443
    %v452 = vrcp.pop %v444
    %v453 = vrcp.pop %v445
    %v454 = vrcp.pop %v446
    %v455 = vrcp.pop %v447
    %v456 = vrcp.pop %v448
    %v457 = vrcp.pop %v449
    %v458 = vrcp.pop %v450
    %v459 = vmul.f32 %v435, %v451
    %v460 = vmul.f32 %v436, %v452
    %v461 = vmul.f32 %v437, %v453
    %v462 = vmul.f32 %v438, %v454
    %v463 = vmul.f32 %v439, %v455
    %v464 = vmul.f32 %v440, %v456
    %v465 = vmul.f32 %v441, %v457
    %v466 = vmul.f32 %v442, %v458
    %v467 = vmul.f32 %v395, %v459
    %v468 = vmul.f32 %v396, %v460
    %v469 = vmul.f32 %v397, %v461
    %v470 = vmul.f32 %v398, %v462
    %v471 = vmul.f32 %v399, %v463
    %v472 = vmul.f32 %v400, %v464
    %v473 = vmul.f32 %v401, %v465
    %v474 = vmul.f32 %v402, %v466
    %v475 = vpack.c.bf16 %v471, %v467
    %v476 = vpack.c.bf16 %v472, %v468
    %v477 = vpack.c.bf16 %v473, %v469
    %v478 = vpack.c.bf16 %v474, %v470
    %v479 = vld [vmem:[#allocation8] sm:$0xff]
    %v480 = vld [vmem:[#allocation8 + $0x8] sm:$0xff]
    %v481 = vld [vmem:[#allocation8 + $0x10] sm:$0xff]
    %v482 = vld [vmem:[#allocation8 + $0x18] sm:$0xff]
    %v483 = vld [vmem:[#allocation8 + $0x20] sm:$0xff]
    %v484 = vld [vmem:[#allocation8 + $0x28] sm:$0xff]
    %v485 = vld [vmem:[#allocation8 + $0x30] sm:$0xff]
    %v486 = vld [vmem:[#allocation8 + $0x38] sm:$0xff]
    %v487 = vld [vmem:[#allocation8 + $0x40] sm:$0xff]
    %v488 = vld [vmem:[#allocation8 + $0x48] sm:$0xff]
    %v489 = vld [vmem:[#allocation8 + $0x50] sm:$0xff]
    %v490 = vld [vmem:[#allocation8 + $0x58] sm:$0xff]
    %v491 = vld [vmem:[#allocation8 + $0x60] sm:$0xff]
    %v492 = vld [vmem:[#allocation8 + $0x68] sm:$0xff]
    %v493 = vld [vmem:[#allocation8 + $0x70] sm:$0xff]
    %v494 = vld [vmem:[#allocation8 + $0x78] sm:$0xff]
    %v495 = vld [vmem:[#allocation8 + $0x80] sm:$0xff]
    %v496 = vld [vmem:[#allocation8 + $0x88] sm:$0xff]
    %v497 = vld [vmem:[#allocation8 + $0x90] sm:$0xff]
    %v498 = vld [vmem:[#allocation8 + $0x98] sm:$0xff]
    %v499 = vld [vmem:[#allocation8 + $0xa0] sm:$0xff]
    %v500 = vld [vmem:[#allocation8 + $0xa8] sm:$0xff]
    %v501 = vld [vmem:[#allocation8 + $0xb0] sm:$0xff]
    %v502 = vld [vmem:[#allocation8 + $0xb8] sm:$0xff]
    %v503 = vld [vmem:[#allocation8 + $0xc0] sm:$0xff]
    %v504 = vld [vmem:[#allocation8 + $0xc8] sm:$0xff]
    %v505 = vld [vmem:[#allocation8 + $0xd0] sm:$0xff]
    %v506 = vld [vmem:[#allocation8 + $0xd8] sm:$0xff]
    %v507 = vld [vmem:[#allocation8 + $0xe0] sm:$0xff]
    %v508 = vld [vmem:[#allocation8 + $0xe8] sm:$0xff]
    %v509 = vld [vmem:[#allocation8 + $0xf0] sm:$0xff]
    %v510 = vld [vmem:[#allocation8 + $0xf8] sm:$0xff]
    %v511 = vld [vmem:[#allocation8 + $0x100] sm:$0xff]
    %v512 = vld [vmem:[#allocation8 + $0x108] sm:$0xff]
    %v513 = vld [vmem:[#allocation8 + $0x110] sm:$0xff]
    %v514 = vld [vmem:[#allocation8 + $0x118] sm:$0xff]
    %v515 = vld [vmem:[#allocation8 + $0x120] sm:$0xff]
    %v516 = vld [vmem:[#allocation8 + $0x128] sm:$0xff]
    %v517 = vld [vmem:[#allocation8 + $0x130] sm:$0xff]
    %v518 = vld [vmem:[#allocation8 + $0x138] sm:$0xff]
    %v519 = vld [vmem:[#allocation8 + $0x140] sm:$0xff]
    %v520 = vld [vmem:[#allocation8 + $0x148] sm:$0xff]
    %v521 = vld [vmem:[#allocation8 + $0x150] sm:$0xff]
    %v522 = vld [vmem:[#allocation8 + $0x158] sm:$0xff]
    %v523 = vld [vmem:[#allocation8 + $0x160] sm:$0xff]
    %v524 = vld [vmem:[#allocation8 + $0x168] sm:$0xff]
    %v525 = vld [vmem:[#allocation8 + $0x170] sm:$0xff]
    %v526 = vld [vmem:[#allocation8 + $0x178] sm:$0xff]
    %v527 = vld [vmem:[#allocation8 + $0x180] sm:$0xff]
    %v528 = vld [vmem:[#allocation8 + $0x188] sm:$0xff]
    %v529 = vld [vmem:[#allocation8 + $0x190] sm:$0xff]
    %v530 = vld [vmem:[#allocation8 + $0x198] sm:$0xff]
    %v531 = vld [vmem:[#allocation8 + $0x1a0] sm:$0xff]
    %v532 = vld [vmem:[#allocation8 + $0x1a8] sm:$0xff]
    %v533 = vld [vmem:[#allocation8 + $0x1b0] sm:$0xff]
    %v534 = vld [vmem:[#allocation8 + $0x1b8] sm:$0xff]
    %v535 = vld [vmem:[#allocation8 + $0x1c0] sm:$0xff]
    %v536 = vld [vmem:[#allocation8 + $0x1c8] sm:$0xff]
    %v537 = vld [vmem:[#allocation8 + $0x1d0] sm:$0xff]
    %v538 = vld [vmem:[#allocation8 + $0x1d8] sm:$0xff]
    %v539 = vld [vmem:[#allocation8 + $0x1e0] sm:$0xff]
    %v540 = vld [vmem:[#allocation8 + $0x1e8] sm:$0xff]
    %v541 = vld [vmem:[#allocation8 + $0x1f0] sm:$0xff]
    %v542 = vld [vmem:[#allocation8 + $0x1f8] sm:$0xff]
    %v543 = vld [vmem:[#allocation8 + $0x200] sm:$0xff]
    %v544 = vld [vmem:[#allocation8 + $0x208] sm:$0xff]
    %v545 = vld [vmem:[#allocation8 + $0x210] sm:$0xff]
    %v546 = vld [vmem:[#allocation8 + $0x218] sm:$0xff]
    %v547 = vld [vmem:[#allocation8 + $0x220] sm:$0xff]
    %v548 = vld [vmem:[#allocation8 + $0x228] sm:$0xff]
    %v549 = vld [vmem:[#allocation8 + $0x230] sm:$0xff]
    %v550 = vld [vmem:[#allocation8 + $0x238] sm:$0xff]
    %v551 = vld [vmem:[#allocation8 + $0x240] sm:$0xff]
    %v552 = vld [vmem:[#allocation8 + $0x248] sm:$0xff]
    %v553 = vld [vmem:[#allocation8 + $0x250] sm:$0xff]
    %v554 = vld [vmem:[#allocation8 + $0x258] sm:$0xff]
    %v555 = vld [vmem:[#allocation8 + $0x260] sm:$0xff]
    %v556 = vld [vmem:[#allocation8 + $0x268] sm:$0xff]
    %v557 = vld [vmem:[#allocation8 + $0x270] sm:$0xff]
    %v558 = vld [vmem:[#allocation8 + $0x278] sm:$0xff]
    %v559 = vld [vmem:[#allocation8 + $0x280] sm:$0xff]
    %v560 = vld [vmem:[#allocation8 + $0x288] sm:$0xff]
    %v561 = vld [vmem:[#allocation8 + $0x290] sm:$0xff]
    %v562 = vld [vmem:[#allocation8 + $0x298] sm:$0xff]
    %v563 = vld [vmem:[#allocation8 + $0x2a0] sm:$0xff]
    %v564 = vld [vmem:[#allocation8 + $0x2a8] sm:$0xff]
    %v565 = vld [vmem:[#allocation8 + $0x2b0] sm:$0xff]
    %v566 = vld [vmem:[#allocation8 + $0x2b8] sm:$0xff]
    %v567 = vld [vmem:[#allocation8 + $0x2c0] sm:$0xff]
    %v568 = vld [vmem:[#allocation8 + $0x2c8] sm:$0xff]
    %v569 = vld [vmem:[#allocation8 + $0x2d0] sm:$0xff]
    %v570 = vld [vmem:[#allocation8 + $0x2d8] sm:$0xff]
    %v571 = vld [vmem:[#allocation8 + $0x2e0] sm:$0xff]
    %v572 = vld [vmem:[#allocation8 + $0x2e8] sm:$0xff]
    %v573 = vld [vmem:[#allocation8 + $0x2f0] sm:$0xff]
    %v574 = vld [vmem:[#allocation8 + $0x2f8] sm:$0xff]
    %v575 = vld [vmem:[#allocation8 + $0x300] sm:$0xff]
    %v576 = vld [vmem:[#allocation8 + $0x308] sm:$0xff]
    %v577 = vld [vmem:[#allocation8 + $0x310] sm:$0xff]
    %v578 = vld [vmem:[#allocation8 + $0x318] sm:$0xff]
    %v579 = vld [vmem:[#allocation8 + $0x320] sm:$0xff]
    %v580 = vld [vmem:[#allocation8 + $0x328] sm:$0xff]
    %v581 = vld [vmem:[#allocation8 + $0x330] sm:$0xff]
    %v582 = vld [vmem:[#allocation8 + $0x338] sm:$0xff]
    %v583 = vld [vmem:[#allocation8 + $0x340] sm:$0xff]
    %v584 = vld [vmem:[#allocation8 + $0x348] sm:$0xff]
    %v585 = vld [vmem:[#allocation8 + $0x350] sm:$0xff]
    %v586 = vld [vmem:[#allocation8 + $0x358] sm:$0xff]
    %v587 = vld [vmem:[#allocation8 + $0x360] sm:$0xff]
    %v588 = vld [vmem:[#allocation8 + $0x368] sm:$0xff]
    %v589 = vld [vmem:[#allocation8 + $0x370] sm:$0xff]
    %v590 = vld [vmem:[#allocation8 + $0x378] sm:$0xff]
    %v591 = vld [vmem:[#allocation8 + $0x380] sm:$0xff]
    %v592 = vld [vmem:[#allocation8 + $0x388] sm:$0xff]
    %v593 = vld [vmem:[#allocation8 + $0x390] sm:$0xff]
    %v594 = vld [vmem:[#allocation8 + $0x398] sm:$0xff]
    %v595 = vld [vmem:[#allocation8 + $0x3a0] sm:$0xff]
    %v596 = vld [vmem:[#allocation8 + $0x3a8] sm:$0xff]
    %v597 = vld [vmem:[#allocation8 + $0x3b0] sm:$0xff]
    %v598 = vld [vmem:[#allocation8 + $0x3b8] sm:$0xff]
    %v599 = vld [vmem:[#allocation8 + $0x3c0] sm:$0xff]
    %v600 = vld [vmem:[#allocation8 + $0x3c8] sm:$0xff]
    %v601 = vld [vmem:[#allocation8 + $0x3d0] sm:$0xff]
    %v602 = vld [vmem:[#allocation8 + $0x3d8] sm:$0xff]
    %v603 = vld [vmem:[#allocation8 + $0x3e0] sm:$0xff]
    %v604 = vld [vmem:[#allocation8 + $0x3e8] sm:$0xff]
    %v605 = vld [vmem:[#allocation8 + $0x3f0] sm:$0xff]
    %v606 = vld [vmem:[#allocation8 + $0x3f8] sm:$0xff]
    %v607 = vld [vmem:[%s6] sm:$0xf]
    %v609 = vlaneseq
    %v610 = vshrl.u32 %v609, 7
    %v611 = vsub.s32 0, %v610
    %v612 = vrot.slane %v607, %v611
    %v613 = vlaneseq
    %v614 = vshrl.u32 %v613, 7
    %v615 = vsub.s32 1, %v614
    %v616 = vrot.slane %v607, %v615
    %v617 = vlaneseq
    %v618 = vshrl.u32 %v617, 7
    %v619 = vsub.s32 2, %v618
    %v620 = vrot.slane %v607, %v619
    %v621 = vlaneseq
    %v622 = vshrl.u32 %v621, 7
    %v623 = vsub.s32 3, %v622
    %v624 = vrot.slane %v607, %v623
    %v757 = vunpack.c.l.b16 %v479
    %v758 = vunpack.c.h.b16 %v479
    %v759 = vunpack.c.l.b16 %v480
    %v760 = vunpack.c.h.b16 %v480
    %v761 = vunpack.c.l.b16 %v481
    %v762 = vunpack.c.h.b16 %v481
    %v763 = vunpack.c.l.b16 %v482
    %v764 = vunpack.c.h.b16 %v482
    %v765 = vunpack.c.l.b16 %v483
    %v766 = vunpack.c.h.b16 %v483
    %v767 = vunpack.c.l.b16 %v484
    %v768 = vunpack.c.h.b16 %v484
    %v769 = vunpack.c.l.b16 %v485
    %v770 = vunpack.c.h.b16 %v485
    %v771 = vunpack.c.l.b16 %v486
    %v772 = vunpack.c.h.b16 %v486
    %v773 = vunpack.c.l.b16 %v487
    %v774 = vunpack.c.h.b16 %v487
    %v775 = vunpack.c.l.b16 %v488
    %v776 = vunpack.c.h.b16 %v488
    %v777 = vunpack.c.l.b16 %v489
    %v778 = vunpack.c.h.b16 %v489
    %v779 = vunpack.c.l.b16 %v490
    %v780 = vunpack.c.h.b16 %v490
    %v781 = vunpack.c.l.b16 %v491
    %v782 = vunpack.c.h.b16 %v491
    %v783 = vunpack.c.l.b16 %v492
    %v784 = vunpack.c.h.b16 %v492
    %v785 = vunpack.c.l.b16 %v493
    %v786 = vunpack.c.h.b16 %v493
    %v787 = vunpack.c.l.b16 %v494
    %v788 = vunpack.c.h.b16 %v494
    %v789 = vunpack.c.l.b16 %v495
    %v790 = vunpack.c.h.b16 %v495
    %v791 = vunpack.c.l.b16 %v496
    %v792 = vunpack.c.h.b16 %v496
    %v793 = vunpack.c.l.b16 %v497
    %v794 = vunpack.c.h.b16 %v497
    %v795 = vunpack.c.l.b16 %v498
    %v796 = vunpack.c.h.b16 %v498
    %v797 = vunpack.c.l.b16 %v499
    %v798 = vunpack.c.h.b16 %v499
    %v799 = vunpack.c.l.b16 %v500
    %v800 = vunpack.c.h.b16 %v500
    %v801 = vunpack.c.l.b16 %v501
    %v802 = vunpack.c.h.b16 %v501
    %v803 = vunpack.c.l.b16 %v502
    %v804 = vunpack.c.h.b16 %v502
    %v805 = vunpack.c.l.b16 %v503
    %v806 = vunpack.c.h.b16 %v503
    %v807 = vunpack.c.l.b16 %v504
    %v808 = vunpack.c.h.b16 %v504
    %v809 = vunpack.c.l.b16 %v505
    %v810 = vunpack.c.h.b16 %v505
    %v811 = vunpack.c.l.b16 %v506
    %v812 = vunpack.c.h.b16 %v506
    %v813 = vunpack.c.l.b16 %v507
    %v814 = vunpack.c.h.b16 %v507
    %v815 = vunpack.c.l.b16 %v508
    %v816 = vunpack.c.h.b16 %v508
    %v817 = vunpack.c.l.b16 %v509
    %v818 = vunpack.c.h.b16 %v509
    %v819 = vunpack.c.l.b16 %v510
    %v820 = vunpack.c.h.b16 %v510
    %v821 = vunpack.c.l.b16 %v511
    %v822 = vunpack.c.h.b16 %v511
    %v823 = vunpack.c.l.b16 %v512
    %v824 = vunpack.c.h.b16 %v512
    %v825 = vunpack.c.l.b16 %v513
    %v826 = vunpack.c.h.b16 %v513
    %v827 = vunpack.c.l.b16 %v514
    %v828 = vunpack.c.h.b16 %v514
    %v829 = vunpack.c.l.b16 %v515
    %v830 = vunpack.c.h.b16 %v515
    %v831 = vunpack.c.l.b16 %v516
    %v832 = vunpack.c.h.b16 %v516
    %v833 = vunpack.c.l.b16 %v517
    %v834 = vunpack.c.h.b16 %v517
    %v835 = vunpack.c.l.b16 %v518
    %v836 = vunpack.c.h.b16 %v518
    %v837 = vunpack.c.l.b16 %v519
    %v838 = vunpack.c.h.b16 %v519
    %v839 = vunpack.c.l.b16 %v520
    %v840 = vunpack.c.h.b16 %v520
    %v841 = vunpack.c.l.b16 %v521
    %v842 = vunpack.c.h.b16 %v521
    %v843 = vunpack.c.l.b16 %v522
    %v844 = vunpack.c.h.b16 %v522
    %v845 = vunpack.c.l.b16 %v523
    %v846 = vunpack.c.h.b16 %v523
    %v847 = vunpack.c.l.b16 %v524
    %v848 = vunpack.c.h.b16 %v524
    %v849 = vunpack.c.l.b16 %v525
    %v850 = vunpack.c.h.b16 %v525
    %v851 = vunpack.c.l.b16 %v526
    %v852 = vunpack.c.h.b16 %v526
    %v853 = vunpack.c.l.b16 %v527
    %v854 = vunpack.c.h.b16 %v527
    %v855 = vunpack.c.l.b16 %v528
    %v856 = vunpack.c.h.b16 %v528
    %v857 = vunpack.c.l.b16 %v529
    %v858 = vunpack.c.h.b16 %v529
    %v859 = vunpack.c.l.b16 %v530
    %v860 = vunpack.c.h.b16 %v530
    %v861 = vunpack.c.l.b16 %v531
    %v862 = vunpack.c.h.b16 %v531
    %v863 = vunpack.c.l.b16 %v532
    %v864 = vunpack.c.h.b16 %v532
    %v865 = vunpack.c.l.b16 %v533
    %v866 = vunpack.c.h.b16 %v533
    %v867 = vunpack.c.l.b16 %v534
    %v868 = vunpack.c.h.b16 %v534
    %v869 = vunpack.c.l.b16 %v535
    %v870 = vunpack.c.h.b16 %v535
    %v871 = vunpack.c.l.b16 %v536
    %v872 = vunpack.c.h.b16 %v536
    %v873 = vunpack.c.l.b16 %v537
    %v874 = vunpack.c.h.b16 %v537
    %v875 = vunpack.c.l.b16 %v538
    %v876 = vunpack.c.h.b16 %v538
    %v877 = vunpack.c.l.b16 %v539
    %v878 = vunpack.c.h.b16 %v539
    %v879 = vunpack.c.l.b16 %v540
    %v880 = vunpack.c.h.b16 %v540
    %v881 = vunpack.c.l.b16 %v541
    %v882 = vunpack.c.h.b16 %v541
    %v883 = vunpack.c.l.b16 %v542
    %v884 = vunpack.c.h.b16 %v542
    %v885 = vunpack.c.l.b16 %v543
    %v886 = vunpack.c.h.b16 %v543
    %v887 = vunpack.c.l.b16 %v544
    %v888 = vunpack.c.h.b16 %v544
    %v889 = vunpack.c.l.b16 %v545
    %v890 = vunpack.c.h.b16 %v545
    %v891 = vunpack.c.l.b16 %v546
    %v892 = vunpack.c.h.b16 %v546
    %v893 = vunpack.c.l.b16 %v547
    %v894 = vunpack.c.h.b16 %v547
    %v895 = vunpack.c.l.b16 %v548
    %v896 = vunpack.c.h.b16 %v548
    %v897 = vunpack.c.l.b16 %v549
    %v898 = vunpack.c.h.b16 %v549
    %v899 = vunpack.c.l.b16 %v550
    %v900 = vunpack.c.h.b16 %v550
    %v901 = vunpack.c.l.b16 %v551
    %v902 = vunpack.c.h.b16 %v551
    %v903 = vunpack.c.l.b16 %v552
    %v904 = vunpack.c.h.b16 %v552
    %v905 = vunpack.c.l.b16 %v553
    %v906 = vunpack.c.h.b16 %v553
    %v907 = vunpack.c.l.b16 %v554
    %v908 = vunpack.c.h.b16 %v554
    %v909 = vunpack.c.l.b16 %v555
    %v910 = vunpack.c.h.b16 %v555
    %v911 = vunpack.c.l.b16 %v556
    %v912 = vunpack.c.h.b16 %v556
    %v913 = vunpack.c.l.b16 %v557
    %v914 = vunpack.c.h.b16 %v557
    %v915 = vunpack.c.l.b16 %v558
    %v916 = vunpack.c.h.b16 %v558
    %v917 = vunpack.c.l.b16 %v559
    %v918 = vunpack.c.h.b16 %v559
    %v919 = vunpack.c.l.b16 %v560
    %v920 = vunpack.c.h.b16 %v560
    %v921 = vunpack.c.l.b16 %v561
    %v922 = vunpack.c.h.b16 %v561
    %v923 = vunpack.c.l.b16 %v562
    %v924 = vunpack.c.h.b16 %v562
    %v925 = vunpack.c.l.b16 %v563
    %v926 = vunpack.c.h.b16 %v563
    %v927 = vunpack.c.l.b16 %v564
    %v928 = vunpack.c.h.b16 %v564
    %v929 = vunpack.c.l.b16 %v565
    %v930 = vunpack.c.h.b16 %v565
    %v931 = vunpack.c.l.b16 %v566
    %v932 = vunpack.c.h.b16 %v566
    %v933 = vunpack.c.l.b16 %v567
    %v934 = vunpack.c.h.b16 %v567
    %v935 = vunpack.c.l.b16 %v568
    %v936 = vunpack.c.h.b16 %v568
    %v937 = vunpack.c.l.b16 %v569
    %v938 = vunpack.c.h.b16 %v569
    %v939 = vunpack.c.l.b16 %v570
    %v940 = vunpack.c.h.b16 %v570
    %v941 = vunpack.c.l.b16 %v571
    %v942 = vunpack.c.h.b16 %v571
    %v943 = vunpack.c.l.b16 %v572
    %v944 = vunpack.c.h.b16 %v572
    %v945 = vunpack.c.l.b16 %v573
    %v946 = vunpack.c.h.b16 %v573
    %v947 = vunpack.c.l.b16 %v574
    %v948 = vunpack.c.h.b16 %v574
    %v949 = vunpack.c.l.b16 %v575
    %v950 = vunpack.c.h.b16 %v575
    %v951 = vunpack.c.l.b16 %v576
    %v952 = vunpack.c.h.b16 %v576
    %v953 = vunpack.c.l.b16 %v577
    %v954 = vunpack.c.h.b16 %v577
    %v955 = vunpack.c.l.b16 %v578
    %v956 = vunpack.c.h.b16 %v578
    %v957 = vunpack.c.l.b16 %v579
    %v958 = vunpack.c.h.b16 %v579
    %v959 = vunpack.c.l.b16 %v580
    %v960 = vunpack.c.h.b16 %v580
    %v961 = vunpack.c.l.b16 %v581
    %v962 = vunpack.c.h.b16 %v581
    %v963 = vunpack.c.l.b16 %v582
    %v964 = vunpack.c.h.b16 %v582
    %v965 = vunpack.c.l.b16 %v583
    %v966 = vunpack.c.h.b16 %v583
    %v967 = vunpack.c.l.b16 %v584
    %v968 = vunpack.c.h.b16 %v584
    %v969 = vunpack.c.l.b16 %v585
    %v970 = vunpack.c.h.b16 %v585
    %v971 = vunpack.c.l.b16 %v586
    %v972 = vunpack.c.h.b16 %v586
    %v973 = vunpack.c.l.b16 %v587
    %v974 = vunpack.c.h.b16 %v587
    %v975 = vunpack.c.l.b16 %v588
    %v976 = vunpack.c.h.b16 %v588
    %v977 = vunpack.c.l.b16 %v589
    %v978 = vunpack.c.h.b16 %v589
    %v979 = vunpack.c.l.b16 %v590
    %v980 = vunpack.c.h.b16 %v590
    %v981 = vunpack.c.l.b16 %v591
    %v982 = vunpack.c.h.b16 %v591
    %v983 = vunpack.c.l.b16 %v592
    %v984 = vunpack.c.h.b16 %v592
    %v985 = vunpack.c.l.b16 %v593
    %v986 = vunpack.c.h.b16 %v593
    %v987 = vunpack.c.l.b16 %v594
    %v988 = vunpack.c.h.b16 %v594
    %v989 = vunpack.c.l.b16 %v595
    %v990 = vunpack.c.h.b16 %v595
    %v991 = vunpack.c.l.b16 %v596
    %v992 = vunpack.c.h.b16 %v596
    %v993 = vunpack.c.l.b16 %v597
    %v994 = vunpack.c.h.b16 %v597
    %v995 = vunpack.c.l.b16 %v598
    %v996 = vunpack.c.h.b16 %v598
    %v997 = vunpack.c.l.b16 %v599
    %v998 = vunpack.c.h.b16 %v599
    %v999 = vunpack.c.l.b16 %v600
    %v1000 = vunpack.c.h.b16 %v600
    %v1001 = vunpack.c.l.b16 %v601
    %v1002 = vunpack.c.h.b16 %v601
    %v1003 = vunpack.c.l.b16 %v602
    %v1004 = vunpack.c.h.b16 %v602
    %v1005 = vunpack.c.l.b16 %v603
    %v1006 = vunpack.c.h.b16 %v603
    %v1007 = vunpack.c.l.b16 %v604
    %v1008 = vunpack.c.h.b16 %v604
    %v1009 = vunpack.c.l.b16 %v605
    %v1010 = vunpack.c.h.b16 %v605
    %v1011 = vunpack.c.l.b16 %v606
    %v1012 = vunpack.c.h.b16 %v606
    %v1013 = vpack.c.b16 %v761, %v757
    %v1014 = vpack.c.b16 %v762, %v758
    %v1015 = vpack.c.b16 %v763, %v759
    %v1016 = vpack.c.b16 %v764, %v760
    %v1017 = vpack.c.b16 %v769, %v765
    %v1018 = vpack.c.b16 %v770, %v766
    %v1019 = vpack.c.b16 %v771, %v767
    %v1020 = vpack.c.b16 %v772, %v768
    %v1021 = vpack.c.b16 %v777, %v773
    %v1022 = vpack.c.b16 %v778, %v774
    %v1023 = vpack.c.b16 %v779, %v775
    %v1024 = vpack.c.b16 %v780, %v776
    %v1025 = vpack.c.b16 %v785, %v781
    %v1026 = vpack.c.b16 %v786, %v782
    %v1027 = vpack.c.b16 %v787, %v783
    %v1028 = vpack.c.b16 %v788, %v784
    %v1029 = vpack.c.b16 %v793, %v789
    %v1030 = vpack.c.b16 %v794, %v790
    %v1031 = vpack.c.b16 %v795, %v791
    %v1032 = vpack.c.b16 %v796, %v792
    %v1033 = vpack.c.b16 %v801, %v797
    %v1034 = vpack.c.b16 %v802, %v798
    %v1035 = vpack.c.b16 %v803, %v799
    %v1036 = vpack.c.b16 %v804, %v800
    %v1037 = vpack.c.b16 %v809, %v805
    %v1038 = vpack.c.b16 %v810, %v806
    %v1039 = vpack.c.b16 %v811, %v807
    %v1040 = vpack.c.b16 %v812, %v808
    %v1041 = vpack.c.b16 %v817, %v813
    %v1042 = vpack.c.b16 %v818, %v814
    %v1043 = vpack.c.b16 %v819, %v815
    %v1044 = vpack.c.b16 %v820, %v816
    %v1045 = vpack.c.b16 %v825, %v821
    %v1046 = vpack.c.b16 %v826, %v822
    %v1047 = vpack.c.b16 %v827, %v823
    %v1048 = vpack.c.b16 %v828, %v824
    %v1049 = vpack.c.b16 %v833, %v829
    %v1050 = vpack.c.b16 %v834, %v830
    %v1051 = vpack.c.b16 %v835, %v831
    %v1052 = vpack.c.b16 %v836, %v832
    %v1053 = vpack.c.b16 %v841, %v837
    %v1054 = vpack.c.b16 %v842, %v838
    %v1055 = vpack.c.b16 %v843, %v839
    %v1056 = vpack.c.b16 %v844, %v840
    %v1057 = vpack.c.b16 %v849, %v845
    %v1058 = vpack.c.b16 %v850, %v846
    %v1059 = vpack.c.b16 %v851, %v847
    %v1060 = vpack.c.b16 %v852, %v848
    %v1061 = vpack.c.b16 %v857, %v853
    %v1062 = vpack.c.b16 %v858, %v854
    %v1063 = vpack.c.b16 %v859, %v855
    %v1064 = vpack.c.b16 %v860, %v856
    %v1065 = vpack.c.b16 %v865, %v861
    %v1066 = vpack.c.b16 %v866, %v862
    %v1067 = vpack.c.b16 %v867, %v863
    %v1068 = vpack.c.b16 %v868, %v864
    %v1069 = vpack.c.b16 %v873, %v869
    %v1070 = vpack.c.b16 %v874, %v870
    %v1071 = vpack.c.b16 %v875, %v871
    %v1072 = vpack.c.b16 %v876, %v872
    %v1073 = vpack.c.b16 %v881, %v877
    %v1074 = vpack.c.b16 %v882, %v878
    %v1075 = vpack.c.b16 %v883, %v879
    %v1076 = vpack.c.b16 %v884, %v880
    %v1077 = vpack.c.b16 %v889, %v885
    %v1078 = vpack.c.b16 %v890, %v886
    %v1079 = vpack.c.b16 %v891, %v887
    %v1080 = vpack.c.b16 %v892, %v888
    %v1081 = vpack.c.b16 %v897, %v893
    %v1082 = vpack.c.b16 %v898, %v894
    %v1083 = vpack.c.b16 %v899, %v895
    %v1084 = vpack.c.b16 %v900, %v896
    %v1085 = vpack.c.b16 %v905, %v901
    %v1086 = vpack.c.b16 %v906, %v902
    %v1087 = vpack.c.b16 %v907, %v903
    %v1088 = vpack.c.b16 %v908, %v904
    %v1089 = vpack.c.b16 %v913, %v909
    %v1090 = vpack.c.b16 %v914, %v910
    %v1091 = vpack.c.b16 %v915, %v911
    %v1092 = vpack.c.b16 %v916, %v912
    %v1093 = vpack.c.b16 %v921, %v917
    %v1094 = vpack.c.b16 %v922, %v918
    %v1095 = vpack.c.b16 %v923, %v919
    %v1096 = vpack.c.b16 %v924, %v920
    %v1097 = vpack.c.b16 %v929, %v925
    %v1098 = vpack.c.b16 %v930, %v926
    %v1099 = vpack.c.b16 %v931, %v927
    %v1100 = vpack.c.b16 %v932, %v928
    %v1101 = vpack.c.b16 %v937, %v933
    %v1102 = vpack.c.b16 %v938, %v934
    %v1103 = vpack.c.b16 %v939, %v935
    %v1104 = vpack.c.b16 %v940, %v936
    %v1105 = vpack.c.b16 %v945, %v941
    %v1106 = vpack.c.b16 %v946, %v942
    %v1107 = vpack.c.b16 %v947, %v943
    %v1108 = vpack.c.b16 %v948, %v944
    %v1109 = vpack.c.b16 %v953, %v949
    %v1110 = vpack.c.b16 %v954, %v950
    %v1111 = vpack.c.b16 %v955, %v951
    %v1112 = vpack.c.b16 %v956, %v952
    %v1113 = vpack.c.b16 %v961, %v957
    %v1114 = vpack.c.b16 %v962, %v958
    %v1115 = vpack.c.b16 %v963, %v959
    %v1116 = vpack.c.b16 %v964, %v960
    %v1117 = vpack.c.b16 %v969, %v965
    %v1118 = vpack.c.b16 %v970, %v966
    %v1119 = vpack.c.b16 %v971, %v967
    %v1120 = vpack.c.b16 %v972, %v968
    %v1121 = vpack.c.b16 %v977, %v973
    %v1122 = vpack.c.b16 %v978, %v974
    %v1123 = vpack.c.b16 %v979, %v975
    %v1124 = vpack.c.b16 %v980, %v976
    %v1125 = vpack.c.b16 %v985, %v981
    %v1126 = vpack.c.b16 %v986, %v982
    %v1127 = vpack.c.b16 %v987, %v983
    %v1128 = vpack.c.b16 %v988, %v984
    %v1129 = vpack.c.b16 %v993, %v989
    %v1130 = vpack.c.b16 %v994, %v990
    %v1131 = vpack.c.b16 %v995, %v991
    %v1132 = vpack.c.b16 %v996, %v992
    %v1133 = vpack.c.b16 %v1001, %v997
    %v1134 = vpack.c.b16 %v1002, %v998
    %v1135 = vpack.c.b16 %v1003, %v999
    %v1136 = vpack.c.b16 %v1004, %v1000
    %v1137 = vpack.c.b16 %v1009, %v1005
    %v1138 = vpack.c.b16 %v1010, %v1006
    %v1139 = vpack.c.b16 %v1011, %v1007
    %v1140 = vpack.c.b16 %v1012, %v1008
    %1269 = vmatprep.subr.bf16.mxu0 %v1042
    %1270 = vmatpush1.bf16.msra.mxu0 %v1041
    %1271 = vmatprep.subr.bf16.mxu0 %v1038
    %1272 = vmatpush1.bf16.msra.mxu0 %v1037
    %1273 = vmatprep.subr.bf16.mxu0 %v1034
    %1274 = vmatpush1.bf16.msra.mxu0 %v1033
    %1275 = vmatprep.subr.bf16.mxu0 %v1030
    %1276 = vmatpush1.bf16.msra.mxu0 %v1029
    %1277 = vmatprep.subr.bf16.mxu0 %v1026
    %1278 = vmatpush1.bf16.msra.mxu0 %v1025
    %1279 = vmatprep.subr.bf16.mxu0 %v1022
    %1280 = vmatpush1.bf16.msra.mxu0 %v1021
    %1281 = vmatprep.subr.bf16.mxu0 %v1018
    %1282 = vmatpush1.bf16.msra.mxu0 %v1017
    %1283 = vmatprep.subr.bf16.mxu0 %v1014
    %1284 = vmatpush1.bf16.msra.mxu0 %v1013
    %1285 = vmatprep.subr.bf16.mxu0 %v1074
    %1286 = vmatpush2.bf16.msra.mxu0 %v1073
    %1287 = vmatprep.subr.bf16.mxu0 %v1070
    %1288 = vmatpush2.bf16.msra.mxu0 %v1069
    %1289 = vmatprep.subr.bf16.mxu0 %v1066
    %1290 = vmatpush2.bf16.msra.mxu0 %v1065
    %1291 = vmatprep.subr.bf16.mxu0 %v1062
    %1292 = vmatpush2.bf16.msra.mxu0 %v1061
    %1293 = vmatprep.subr.bf16.mxu0 %v1058
    %1294 = vmatpush2.bf16.msra.mxu0 %v1057
    %1295 = vmatprep.subr.bf16.mxu0 %v1054
    %1296 = vmatpush2.bf16.msra.mxu0 %v1053
    %1297 = vmatprep.subr.bf16.mxu0 %v1050
    %1298 = vmatpush2.bf16.msra.mxu0 %v1049
    %1299 = vmatprep.subr.bf16.mxu0 %v1046
    %1300 = vmatpush2.bf16.msra.mxu0 %v1045
    %1301 = vmatprep.mubr.bf16.mxu0 %v476
    %1302 = vmatmul.mubr.bf16.gmra.mxu0 %v475
    %v1303 = vpop.f32.mrf.mxu0
    %v1304 = vadd.f32 %v612, %v1303
    %v1305 = vpop.f32.mrf.mxu0
    %v1306 = vadd.f32 %v616, %v1305
    %v1307 = vpop.f32.mrf.mxu0
    %v1308 = vadd.f32 %v612, %v1307
    %v1309 = vpop.f32.mrf.mxu0
    %v1310 = vadd.f32 %v616, %v1309
    %1311 = vdwg.mxu0
    %1312 = vmatprep.subr.bf16.mxu0 %v1106
    %1313 = vmatpush1.bf16.msra.mxu0 %v1105
    %1314 = vmatprep.subr.bf16.mxu0 %v1102
    %1315 = vmatpush1.bf16.msra.mxu0 %v1101
    %1316 = vmatprep.subr.bf16.mxu0 %v1098
    %1317 = vmatpush1.bf16.msra.mxu0 %v1097
    %1318 = vmatprep.subr.bf16.mxu0 %v1094
    %1319 = vmatpush1.bf16.msra.mxu0 %v1093
    %1320 = vmatprep.subr.bf16.mxu0 %v1090
    %1321 = vmatpush1.bf16.msra.mxu0 %v1089
    %1322 = vmatprep.subr.bf16.mxu0 %v1086
    %1323 = vmatpush1.bf16.msra.mxu0 %v1085
    %1324 = vmatprep.subr.bf16.mxu0 %v1082
    %1325 = vmatpush1.bf16.msra.mxu0 %v1081
    %1326 = vmatprep.subr.bf16.mxu0 %v1078
    %1327 = vmatpush1.bf16.msra.mxu0 %v1077
    %1328 = vmatprep.subr.bf16.mxu0 %v1138
    %1329 = vmatpush2.bf16.msra.mxu0 %v1137
    %1330 = vmatprep.subr.bf16.mxu0 %v1134
    %1331 = vmatpush2.bf16.msra.mxu0 %v1133
    %1332 = vmatprep.subr.bf16.mxu0 %v1130
    %1333 = vmatpush2.bf16.msra.mxu0 %v1129
    %1334 = vmatprep.subr.bf16.mxu0 %v1126
    %1335 = vmatpush2.bf16.msra.mxu0 %v1125
    %1336 = vmatprep.subr.bf16.mxu0 %v1122
    %1337 = vmatpush2.bf16.msra.mxu0 %v1121
    %1338 = vmatprep.subr.bf16.mxu0 %v1118
    %1339 = vmatpush2.bf16.msra.mxu0 %v1117
    %1340 = vmatprep.subr.bf16.mxu0 %v1114
    %1341 = vmatpush2.bf16.msra.mxu0 %v1113
    %1342 = vmatprep.subr.bf16.mxu0 %v1110
    %1343 = vmatpush2.bf16.msra.mxu0 %v1109
    %1344 = vmatprep.mubr.bf16.mxu0 %v478
    %1345 = vmatmul.mubr.bf16.gmra.mxu0 %v477
    %v1346 = vpop.f32.mrf.mxu0
    %v1347 = vadd.f32 %v1304, %v1346
    %v1348 = vpop.f32.mrf.mxu0
    %v1349 = vadd.f32 %v1306, %v1348
    %v1350 = vpop.f32.mrf.mxu0
    %v1351 = vadd.f32 %v1308, %v1350
    %v1352 = vpop.f32.mrf.mxu0
    %v1353 = vadd.f32 %v1310, %v1352
    %1354 = vdwg.mxu0
    %1355 = vmatprep.subr.bf16.mxu0 %v1044
    %1356 = vmatpush1.bf16.msra.mxu0 %v1043
    %1357 = vmatprep.subr.bf16.mxu0 %v1040
    %1358 = vmatpush1.bf16.msra.mxu0 %v1039
    %1359 = vmatprep.subr.bf16.mxu0 %v1036
    %1360 = vmatpush1.bf16.msra.mxu0 %v1035
    %1361 = vmatprep.subr.bf16.mxu0 %v1032
    %1362 = vmatpush1.bf16.msra.mxu0 %v1031
    %1363 = vmatprep.subr.bf16.mxu0 %v1028
    %1364 = vmatpush1.bf16.msra.mxu0 %v1027
    %1365 = vmatprep.subr.bf16.mxu0 %v1024
    %1366 = vmatpush1.bf16.msra.mxu0 %v1023
    %1367 = vmatprep.subr.bf16.mxu0 %v1020
    %1368 = vmatpush1.bf16.msra.mxu0 %v1019
    %1369 = vmatprep.subr.bf16.mxu0 %v1016
    %1370 = vmatpush1.bf16.msra.mxu0 %v1015
    %1371 = vmatprep.subr.bf16.mxu0 %v1076
    %1372 = vmatpush2.bf16.msra.mxu0 %v1075
    %1373 = vmatprep.subr.bf16.mxu0 %v1072
    %1374 = vmatpush2.bf16.msra.mxu0 %v1071
    %1375 = vmatprep.subr.bf16.mxu0 %v1068
    %1376 = vmatpush2.bf16.msra.mxu0 %v1067
    %1377 = vmatprep.subr.bf16.mxu0 %v1064
    %1378 = vmatpush2.bf16.msra.mxu0 %v1063
    %1379 = vmatprep.subr.bf16.mxu0 %v1060
    %1380 = vmatpush2.bf16.msra.mxu0 %v1059
    %1381 = vmatprep.subr.bf16.mxu0 %v1056
    %1382 = vmatpush2.bf16.msra.mxu0 %v1055
    %1383 = vmatprep.subr.bf16.mxu0 %v1052
    %1384 = vmatpush2.bf16.msra.mxu0 %v1051
    %1385 = vmatprep.subr.bf16.mxu0 %v1048
    %1386 = vmatpush2.bf16.msra.mxu0 %v1047
    %1387 = vmatprep.mubr.bf16.mxu0 %v476
    %1388 = vmatmul.mubr.bf16.gmra.mxu0 %v475
    %v1389 = vpop.f32.mrf.mxu0
    %v1390 = vadd.f32 %v620, %v1389
    %v1391 = vpop.f32.mrf.mxu0
    %v1392 = vadd.f32 %v624, %v1391
    %v1393 = vpop.f32.mrf.mxu0
    %v1394 = vadd.f32 %v620, %v1393
    %v1395 = vpop.f32.mrf.mxu0
    %v1396 = vadd.f32 %v624, %v1395
    %1397 = vdwg.mxu0
    %1398 = vmatprep.subr.bf16.mxu0 %v1108
    %1399 = vmatpush1.bf16.msra.mxu0 %v1107
    %1400 = vmatprep.subr.bf16.mxu0 %v1104
    %1401 = vmatpush1.bf16.msra.mxu0 %v1103
    %1402 = vmatprep.subr.bf16.mxu0 %v1100
    %1403 = vmatpush1.bf16.msra.mxu0 %v1099
    %1404 = vmatprep.subr.bf16.mxu0 %v1096
    %1405 = vmatpush1.bf16.msra.mxu0 %v1095
    %1406 = vmatprep.subr.bf16.mxu0 %v1092
    %1407 = vmatpush1.bf16.msra.mxu0 %v1091
    %1408 = vmatprep.subr.bf16.mxu0 %v1088
    %1409 = vmatpush1.bf16.msra.mxu0 %v1087
    %1410 = vmatprep.subr.bf16.mxu0 %v1084
    %1411 = vmatpush1.bf16.msra.mxu0 %v1083
    %1412 = vmatprep.subr.bf16.mxu0 %v1080
    %1413 = vmatpush1.bf16.msra.mxu0 %v1079
    %1414 = vmatprep.subr.bf16.mxu0 %v1140
    %1415 = vmatpush2.bf16.msra.mxu0 %v1139
    %1416 = vmatprep.subr.bf16.mxu0 %v1136
    %1417 = vmatpush2.bf16.msra.mxu0 %v1135
    %1418 = vmatprep.subr.bf16.mxu0 %v1132
    %1419 = vmatpush2.bf16.msra.mxu0 %v1131
    %1420 = vmatprep.subr.bf16.mxu0 %v1128
    %1421 = vmatpush2.bf16.msra.mxu0 %v1127
    %1422 = vmatprep.subr.bf16.mxu0 %v1124
    %1423 = vmatpush2.bf16.msra.mxu0 %v1123
    %1424 = vmatprep.subr.bf16.mxu0 %v1120
    %1425 = vmatpush2.bf16.msra.mxu0 %v1119
    %1426 = vmatprep.subr.bf16.mxu0 %v1116
    %1427 = vmatpush2.bf16.msra.mxu0 %v1115
    %1428 = vmatprep.subr.bf16.mxu0 %v1112
    %1429 = vmatpush2.bf16.msra.mxu0 %v1111
    %1430 = vmatprep.mubr.bf16.mxu0 %v478
    %1431 = vmatmul.mubr.bf16.gmra.mxu0 %v477
    %v1432 = vpop.f32.mrf.mxu0
    %v1433 = vadd.f32 %v1390, %v1432
    %v1434 = vpop.f32.mrf.mxu0
    %v1435 = vadd.f32 %v1392, %v1434
    %v1436 = vpop.f32.mrf.mxu0
    %v1437 = vadd.f32 %v1394, %v1436
    %v1438 = vpop.f32.mrf.mxu0
    %v1439 = vadd.f32 %v1396, %v1438
    %1440 = vdwg.mxu0
    %v1441 = vld [vmem:[#allocation10] sm:$0xf]
    %v1442 = vld [vmem:[%s8] sm:$0xf]
    %v1443 = vadd.f32 %v1347, %v1349
    %v1444 = vadd.f32 %v1443, %v1433
    %v1445 = vadd.f32 %v1444, %v1435
    %1446 = vadd.xlane.f32.xlu0 %v1445
    %v1447 = vpop.xlane.xlu0 %1446
    %v1448 = vadd.f32 %v1351, %v1353
    %v1449 = vadd.f32 %v1448, %v1437
    %v1450 = vadd.f32 %v1449, %v1439
    %1451 = vadd.xlane.f32.xlu0 %v1450
    %v1452 = vpop.xlane.xlu0 %1451
    %v1453 = vmul.f32 %v1447, %v296
    %v1454 = vmul.f32 %v1452, %v296
    %v1455 = vmul.f32 %v1347, %v1347
    %v1456 = vmul.f32 %v1349, %v1349
    %v1457 = vmul.f32 %v1433, %v1433
    %v1458 = vmul.f32 %v1435, %v1435
    %v1459 = vmul.f32 %v1351, %v1351
    %v1460 = vmul.f32 %v1353, %v1353
    %v1461 = vmul.f32 %v1437, %v1437
    %v1462 = vmul.f32 %v1439, %v1439
    %v1463 = vadd.f32 %v1455, %v1456
    %v1464 = vadd.f32 %v1463, %v1457
    %v1465 = vadd.f32 %v1464, %v1458
    %1466 = vadd.xlane.f32.xlu0 %v1465
    %v1467 = vpop.xlane.xlu0 %1466
    %v1468 = vadd.f32 %v1459, %v1460
    %v1469 = vadd.f32 %v1468, %v1461
    %v1470 = vadd.f32 %v1469, %v1462
    %1471 = vadd.xlane.f32.xlu0 %v1470
    %v1472 = vpop.xlane.xlu0 %1471
    %v1473 = vmul.f32 %v1467, %v296
    %v1474 = vmul.f32 %v1472, %v296
    %v1475 = vmul.f32 %v1453, %v1453
    %v1476 = vmul.f32 %v1454, %v1454
    %v1477 = vsub.f32 %v1473, %v1475
    %v1478 = vsub.f32 %v1474, %v1476
    %v1479 = vmax.f32 %v1477, 0.0
    %v1480 = vmax.f32 %v1478, 0.0
    %v1481 = vsub.f32 %v1347, %v1453
    %v1482 = vsub.f32 %v1349, %v1453
    %v1483 = vsub.f32 %v1433, %v1453
    %v1484 = vsub.f32 %v1435, %v1453
    %v1485 = vsub.f32 %v1351, %v1454
    %v1486 = vsub.f32 %v1353, %v1454
    %v1487 = vsub.f32 %v1437, %v1454
    %v1488 = vsub.f32 %v1439, %v1454
    %v1489 = vadd.f32 %v1479, 1e-05
    %v1490 = vadd.f32 %v1480, 1e-05
    %v1491 = vrsqrt.pop %v1489
    %v1492 = vrsqrt.pop %v1490
    %v1493 = vmul.f32 %v1481, %v1491
    %v1494 = vmul.f32 %v1482, %v1491
    %v1495 = vmul.f32 %v1483, %v1491
    %v1496 = vmul.f32 %v1484, %v1491
    %v1497 = vmul.f32 %v1485, %v1492
    %v1498 = vmul.f32 %v1486, %v1492
    %v1499 = vmul.f32 %v1487, %v1492
    %v1500 = vmul.f32 %v1488, %v1492
    %v1502 = vlaneseq
    %v1503 = vshrl.u32 %v1502, 7
    %v1504 = vsub.s32 0, %v1503
    %v1505 = vrot.slane %v1441, %v1504
    %v1506 = vlaneseq
    %v1507 = vshrl.u32 %v1506, 7
    %v1508 = vsub.s32 1, %v1507
    %v1509 = vrot.slane %v1441, %v1508
    %v1510 = vlaneseq
    %v1511 = vshrl.u32 %v1510, 7
    %v1512 = vsub.s32 2, %v1511
    %v1513 = vrot.slane %v1441, %v1512
    %v1514 = vlaneseq
    %v1515 = vshrl.u32 %v1514, 7
    %v1516 = vsub.s32 3, %v1515
    %v1517 = vrot.slane %v1441, %v1516
    %v1522 = vmul.f32 %v1493, %v1505
    %v1523 = vmul.f32 %v1494, %v1509
    %v1524 = vmul.f32 %v1495, %v1513
    %v1525 = vmul.f32 %v1496, %v1517
    %v1526 = vmul.f32 %v1497, %v1505
    %v1527 = vmul.f32 %v1498, %v1509
    %v1528 = vmul.f32 %v1499, %v1513
    %v1529 = vmul.f32 %v1500, %v1517
    %v1531 = vlaneseq
    %v1532 = vshrl.u32 %v1531, 7
    %v1533 = vsub.s32 0, %v1532
    %v1534 = vrot.slane %v1442, %v1533
    %v1535 = vlaneseq
    %v1536 = vshrl.u32 %v1535, 7
    %v1537 = vsub.s32 1, %v1536
    %v1538 = vrot.slane %v1442, %v1537
    %v1539 = vlaneseq
    %v1540 = vshrl.u32 %v1539, 7
    %v1541 = vsub.s32 2, %v1540
    %v1542 = vrot.slane %v1442, %v1541
    %v1543 = vlaneseq
    %v1544 = vshrl.u32 %v1543, 7
    %v1545 = vsub.s32 3, %v1544
    %v1546 = vrot.slane %v1442, %v1545
    %v1551 = vadd.f32 %v1522, %v1534
    %v1552 = vadd.f32 %v1523, %v1538
    %v1553 = vadd.f32 %v1524, %v1542
    %v1554 = vadd.f32 %v1525, %v1546
    %v1555 = vadd.f32 %v1526, %v1534
    %v1556 = vadd.f32 %v1527, %v1538
    %v1557 = vadd.f32 %v1528, %v1542
    %v1558 = vadd.f32 %v1529, %v1546
    %v1559 = vmin.f32 %v1551, 20.0
    %v1560 = vmin.f32 %v1552, 20.0
    %v1561 = vmin.f32 %v1553, 20.0
    %v1562 = vmin.f32 %v1554, 20.0
    %v1563 = vmin.f32 %v1555, 20.0
    %v1564 = vmin.f32 %v1556, 20.0
    %v1565 = vmin.f32 %v1557, 20.0
    %v1566 = vmin.f32 %v1558, 20.0
    %v1567 = vmul.f32 %v1559, 1.442695
    %v1568 = vpow.pop %v1567
    %v1569 = vmul.f32 %v1560, 1.442695
    %v1570 = vpow.pop %v1569
    %v1571 = vmul.f32 %v1561, 1.442695
    %v1572 = vpow.pop %v1571
    %v1573 = vmul.f32 %v1562, 1.442695
    %v1574 = vpow.pop %v1573
    %v1575 = vmul.f32 %v1563, 1.442695
    %v1576 = vpow.pop %v1575
    %v1577 = vmul.f32 %v1564, 1.442695
    %v1578 = vpow.pop %v1577
    %v1579 = vmul.f32 %v1565, 1.442695
    %v1580 = vpow.pop %v1579
    %v1581 = vmul.f32 %v1566, 1.442695
    %v1582 = vpow.pop %v1581
    %v1583 = vadd.f32 %v1568, 2.0
    %v1584 = vadd.f32 %v1570, 2.0
    %v1585 = vadd.f32 %v1572, 2.0
    %v1586 = vadd.f32 %v1574, 2.0
    %v1587 = vadd.f32 %v1576, 2.0
    %v1588 = vadd.f32 %v1578, 2.0
    %v1589 = vadd.f32 %v1580, 2.0
    %v1590 = vadd.f32 %v1582, 2.0
    %v1591 = vmul.f32 %v1568, %v1583
    %v1592 = vmul.f32 %v1570, %v1584
    %v1593 = vmul.f32 %v1572, %v1585
    %v1594 = vmul.f32 %v1574, %v1586
    %v1595 = vmul.f32 %v1576, %v1587
    %v1596 = vmul.f32 %v1578, %v1588
    %v1597 = vmul.f32 %v1580, %v1589
    %v1598 = vmul.f32 %v1582, %v1590
    %v1599 = vadd.f32 %v1591, 2.0
    %v1600 = vadd.f32 %v1592, 2.0
    %v1601 = vadd.f32 %v1593, 2.0
    %v1602 = vadd.f32 %v1594, 2.0
    %v1603 = vadd.f32 %v1595, 2.0
    %v1604 = vadd.f32 %v1596, 2.0
    %v1605 = vadd.f32 %v1597, 2.0
    %v1606 = vadd.f32 %v1598, 2.0
    %v1607 = vrcp.pop %v1599
    %v1608 = vrcp.pop %v1600
    %v1609 = vrcp.pop %v1601
    %v1610 = vrcp.pop %v1602
    %v1611 = vrcp.pop %v1603
    %v1612 = vrcp.pop %v1604
    %v1613 = vrcp.pop %v1605
    %v1614 = vrcp.pop %v1606
    %v1615 = vmul.f32 %v1591, %v1607
    %v1616 = vmul.f32 %v1592, %v1608
    %v1617 = vmul.f32 %v1593, %v1609
    %v1618 = vmul.f32 %v1594, %v1610
    %v1619 = vmul.f32 %v1595, %v1611
    %v1620 = vmul.f32 %v1596, %v1612
    %v1621 = vmul.f32 %v1597, %v1613
    %v1622 = vmul.f32 %v1598, %v1614
    %v1623 = vmul.f32 %v1551, %v1615
    %v1624 = vmul.f32 %v1552, %v1616
    %v1625 = vmul.f32 %v1553, %v1617
    %v1626 = vmul.f32 %v1554, %v1618
    %v1627 = vmul.f32 %v1555, %v1619
    %v1628 = vmul.f32 %v1556, %v1620
    %v1629 = vmul.f32 %v1557, %v1621
    %v1630 = vmul.f32 %v1558, %v1622
    %v1631 = vld [vmem:[#allocation11] sm:$0xf]
    %v1633 = vlaneseq
    %v1634 = vshrl.u32 %v1633, 7
    %v1635 = vsub.s32 0, %v1634
    %v1636 = vrot.slane %v1631, %v1635
    %v1637 = vlaneseq
    %v1638 = vshrl.u32 %v1637, 7
    %v1639 = vsub.s32 1, %v1638
    %v1640 = vrot.slane %v1631, %v1639
    %v1641 = vlaneseq
    %v1642 = vshrl.u32 %v1641, 7
    %v1643 = vsub.s32 2, %v1642
    %v1644 = vrot.slane %v1631, %v1643
    %v1645 = vlaneseq
    %v1646 = vshrl.u32 %v1645, 7
    %v1647 = vsub.s32 3, %v1646
    %v1648 = vrot.slane %v1631, %v1647
    %v1653 = vmul.f32 %v1623, %v1636
    %v1654 = vmul.f32 %v1624, %v1640
    %v1655 = vmul.f32 %v1625, %v1644
    %v1656 = vmul.f32 %v1626, %v1648
    %v1657 = vmul.f32 %v1627, %v1636
    %v1658 = vmul.f32 %v1628, %v1640
    %v1659 = vmul.f32 %v1629, %v1644
    %v1660 = vmul.f32 %v1630, %v1648
    %v1661 = vadd.f32 %v1653, %v1654
    %v1662 = vadd.f32 %v1661, %v1655
    %v1663 = vadd.f32 %v1662, %v1656
    %1664 = vadd.xlane.f32.xlu0 %v1663
    %v1665 = vpop.xlane.xlu0 %1664
    %v1666 = vadd.f32 %v1657, %v1658
    %v1667 = vadd.f32 %v1666, %v1659
    %v1668 = vadd.f32 %v1667, %v1660
    %1669 = vadd.xlane.f32.xlu0 %v1668
    %v1670 = vpop.xlane.xlu0 %1669
    %v1671 = vld [vmem:[#allocation2] sm:$0x1]
    %v1673 = vlaneseq
    %v1674 = vshrl.u32 %v1673, 7
    %v1675 = vsub.s32 0, %v1674
    %v1676 = vrot.slane %v1671, %v1675
    %v1678 = vadd.f32 %v1665, %v1676
    %v1679 = vadd.f32 %v1670, %v1676
    %vm1680 = vcmask 7168
    %1681 = vst.msk [vmem:[%s11] sm:$0xff] %vm1680, %v1678
    %1682 = vst.msk [vmem:[%s11 + $0x8] sm:$0xff] %vm1680, %v1679
    // Predicated region
    $region70: #{tpu_custom_call.1} parent=1 // pred_check
      _
    $region71: #{tpu_custom_call.1} parent=1 // pred_check_branch
      %1684 = sbr.rel (0) target = $region73
    $region72: #{tpu_custom_call.1} parent=1 // pred_region
      _
    $region73: #{tpu_custom_call.1} parent=1 // pred_fallthru
      _
    // Predicated region
    $region74: #{tpu_custom_call.1} parent=1 // pred_check
      _
    $region75: #{tpu_custom_call.1} parent=1 // pred_check_branch
      %1686 = sbr.rel (0) target = $region77
    $region76: #{tpu_custom_call.1} parent=1 // pred_region
      _
    $region77: #{tpu_custom_call.1} parent=1 // pred_fallthru
      _
    %1687 = vsyncpa [#allocation4], 1
    %1688 = vsyncpa [#allocation6], 1
    %1689 = vsyncpa [#allocation9], 1
    %1690 = vsyncpa [#allocation12], 1

</llo_original>
